<compile_context>
chip_gen: v6e
topology: v6e:2x2x1
jax: 0.10.0
libtpu: 0.0.40
codegen_flags: <defaults>
</compile_context>

<pallas_src>
import functools

import jax
import jax.numpy as jnp
from jax import lax
from jax.experimental import pallas as pl
from jax.experimental.pallas import tpu as pltpu


_BN_EPS = 1e-5
_NORM_EPS_SQ = 1e-24      # F.normalize(eps=1e-12) applied to the squared norm.
_NEG_BIG = -1e30          # bias for padded topic columns -> softmax weight 0


def _round_up(n, m):
    return ((n + m - 1) // m) * m


@functools.lru_cache(maxsize=1)
def _vmem_limit_bytes():
    """Per-generation scoped-VMEM budget (half of physical VMEM, >= 32 MiB)."""
    try:
        cap = int(pltpu.get_tpu_info().vmem_capacity_bytes)
    except Exception:
        cap = 64 * 1024 * 1024
    return max(32 * 1024 * 1024, min(cap // 2, 96 * 1024 * 1024))


# ----------------------------------------------------------------------------
# Kernel 1: encoder -> theta
#   grid = (V_pad // TV,)   (pure reduction over the vocab axis, "arbitrary")
#   x tile (B, TV) f32 (cast to bf16 in VMEM), w1 tile (TV, E) bf16 streamed
#   exactly once; h accumulates in a (B, E) f32 VMEM scratch; Linear2(+folded
#   BN) + softmax runs once under pl.when on the last vocab tile.
# ----------------------------------------------------------------------------
def _encoder_kernel(x_ref, w1_ref, b1_ref, w2_ref, b2_ref, theta_ref, h_acc):
    k = pl.program_id(0)

    @pl.when(k == 0)
    def _init():
        h_acc[...] = jnp.zeros_like(h_acc)

    # Partial Linear1: (B, TV) @ (TV, E); bf16 MXU operands, f32 accumulation.
    xb = x_ref[...].astype(jnp.bfloat16)          # VPU cast in VMEM, no HBM pass
    h_acc[...] += jnp.dot(xb, w1_ref[...], preferred_element_type=jnp.float32)

    @pl.when(k == pl.num_programs(0) - 1)
    def _epilogue():
        # Bias + ReLU.  (nn.Dropout is identity in eval mode.)
        h = jnp.maximum(h_acc[...] + b1_ref[...], 0.0)                   # (B, E)
        # Linear2 with BatchNorm1d(eval) pre-folded; padded columns get -1e30.
        logits = jnp.dot(h, w2_ref[...],
                         preferred_element_type=jnp.float32) + b2_ref[...]
        m = jnp.max(logits, axis=-1, keepdims=True)
        e = jnp.exp(logits - m)
        denom = jnp.sum(e, axis=-1, keepdims=True)
        theta_ref[...] = e * pl.reciprocal(denom, approx=True)


# ----------------------------------------------------------------------------
# Kernel 2: beta / M
#   grid = (V_pad // TV,)   ("parallel")
#   te_n (K, D) bf16 resident; we_t tile (D, TV) bf16; inv-norm row (1, TV) f32.
#   beta_tile = (te_n @ we_t_tile) * inv_norm ; M_tile = 1 - beta_tile.
# ----------------------------------------------------------------------------
def _beta_kernel(te_ref, wet_ref, inv_ref, beta_ref, m_ref):
    prod = jnp.dot(te_ref[...], wet_ref[...],
                   preferred_element_type=jnp.float32)                   # (K, TV)
    beta = prod * inv_ref[...]
    beta_ref[...] = beta
    m_ref[...] = 1.0 - beta


def prepare_params(params, *, block_v_enc=4096, block_v_beta=2048):
    """One-time, parameter-load-side preprocessing (NOT per forward call)."""
    w1 = params["w1"].astype(jnp.float32)                # (V, E)
    V, E = w1.shape
    K = params["w2"].shape[1]
    D = params["word_emb"].shape[1]

    # --- constant-fold BatchNorm1d (eval, running stats) into Linear2 -------
    scale = params["bn_gamma"] * lax.rsqrt(params["bn_rvar"] + _BN_EPS)  # (1, K)
    w2_f = (params["w2"] * scale).astype(jnp.float32)                    # (E, K)
    b2_f = ((params["b2"] - params["bn_rmean"]) * scale
            + params["bn_beta"]).astype(jnp.float32)                     # (1, K)

    # --- pad topics to a multiple of 128 for lane-dense theta stores --------
    K_pad = _round_up(K, 128)
    if K_pad > K:
        w2_f = jnp.pad(w2_f, ((0, 0), (0, K_pad - K)))
        b2_f = jnp.pad(b2_f, ((0, 0), (0, K_pad - K)), constant_values=_NEG_BIG)

    # --- encoder-side vocab padding + bf16 weight cast -----------------------
    tv_e = min(block_v_enc, _round_up(V, 128))
    v_pad_e = _round_up(V, tv_e)
    if v_pad_e > V:
        w1 = jnp.pad(w1, ((0, v_pad_e - V), (0, 0)))
    w1_bf = w1.astype(jnp.bfloat16)

    # --- beta-side: transpose word_emb, per-word inverse norms, padding ------
    tv_b = min(block_v_beta, _round_up(V, 128))
    v_pad_b = _round_up(V, tv_b)
    we = params["word_emb"].astype(jnp.float32)                          # (V, D)
    inv = lax.rsqrt(jnp.maximum(jnp.sum(we * we, axis=-1), _NORM_EPS_SQ))  # (V,)
    we_t = we.T                                                          # (D, V)
    if v_pad_b > V:
        we_t = jnp.pad(we_t, ((0, 0), (0, v_pad_b - V)))
        inv = jnp.pad(inv, (0, v_pad_b - V))
    we_t_bf = we_t.astype(jnp.bfloat16)
    inv = inv.reshape(1, v_pad_b)

    # --- topic embeddings: normalize once, cast once -------------------------
    te = params["topic_emb"].astype(jnp.float32)                         # (K, D)
    te_n = te * lax.rsqrt(
        jnp.maximum(jnp.sum(te * te, axis=-1, keepdims=True), _NORM_EPS_SQ))
    te_n_bf = te_n.astype(jnp.bfloat16)

    return dict(
        w1=w1_bf,                               # (V_pad_e, E) bf16
        b1=params["b1"].astype(jnp.float32),    # (1, E)
        w2=w2_f,                                # (E, K_pad) f32 (BN folded)
        b2=b2_f,                                # (1, K_pad) f32 (BN folded)
        we_t=we_t_bf,                           # (D, V_pad_b) bf16
        w_invnorm=inv,                          # (1, V_pad_b) f32
        te_n=te_n_bf,                           # (K, D) bf16, L2-normalized
    )


@functools.partial(jax.jit, static_argnames=("block_v_enc", "block_v_beta"))
def nstm_forward(x, p, *, block_v_enc=4096, block_v_beta=2048):
    """Returns (theta, beta, M) exactly like NSTMBase.forward({'bow': x}) (eval)."""
    B, V = x.shape
    E = p["b1"].shape[1]
    K_pad = p["w2"].shape[1]
    K, D = p["te_n"].shape
    vmem_limit = _vmem_limit_bytes()

    # ---------------- encoder: theta -----------------------------------------
    v_pad_e = p["w1"].shape[0]
    tv_e = min(block_v_enc, v_pad_e)
    x_p = jnp.pad(x, ((0, 0), (0, v_pad_e - V))) if v_pad_e > V else x

    theta_pad = pl.pallas_call(
        _encoder_kernel,
        out_shape=jax.ShapeDtypeStruct((B, K_pad), jnp.float32),
        grid_spec=pltpu.PrefetchScalarGridSpec(
            num_scalar_prefetch=0,
            grid=(v_pad_e // tv_e,),
            in_specs=[
                pl.BlockSpec((B, tv_e), lambda k: (0, k)),      # x tile (f32)
                pl.BlockSpec((tv_e, E), lambda k: (k, 0)),      # w1 tile (bf16)
                pl.BlockSpec((1, E), lambda k: (0, 0)),         # b1 (resident)
                pl.BlockSpec((E, K_pad), lambda k: (0, 0)),     # w2' (BN folded)
                pl.BlockSpec((1, K_pad), lambda k: (0, 0)),     # b2' (BN folded)
            ],
            out_specs=pl.BlockSpec((B, K_pad), lambda k: (0, 0)),  # resident
            scratch_shapes=[pltpu.VMEM((B, E), jnp.float32)],      # h accumulator
        ),
        compiler_params=pltpu.CompilerParams(
            dimension_semantics=("arbitrary",),                    # pure reduction
            vmem_limit_bytes=vmem_limit,
        ),
    )(x_p, p["w1"], p["b1"], p["w2"], p["b2"])
    theta = theta_pad[:, :K] if K_pad > K else theta_pad

    # ---------------- topic-word matrix: beta, M ------------------------------
    v_pad_b = p["we_t"].shape[1]
    tv_b = min(block_v_beta, v_pad_b)

    beta_pad, m_pad = pl.pallas_call(
        _beta_kernel,
        out_shape=(jax.ShapeDtypeStruct((K, v_pad_b), jnp.float32),
                   jax.ShapeDtypeStruct((K, v_pad_b), jnp.float32)),
        grid_spec=pltpu.PrefetchScalarGridSpec(
            num_scalar_prefetch=0,
            grid=(v_pad_b // tv_b,),
            in_specs=[
                pl.BlockSpec((K, D), lambda j: (0, 0)),         # te_n (tiny, resident)
                pl.BlockSpec((D, tv_b), lambda j: (0, j)),      # word_emb^T tile
                pl.BlockSpec((1, tv_b), lambda j: (0, j)),      # per-word 1/||w||
            ],
            out_specs=[
                pl.BlockSpec((K, tv_b), lambda j: (0, j)),      # beta (lane dense)
                pl.BlockSpec((K, tv_b), lambda j: (0, j)),      # M = 1 - beta
            ],
        ),
        compiler_params=pltpu.CompilerParams(
            dimension_semantics=("parallel",),
            vmem_limit_bytes=vmem_limit,
        ),
    )(p["te_n"], p["we_t"], p["w_invnorm"])

    if v_pad_b > V:
        beta, M = beta_pad[:, :V], m_pad[:, :V]
    else:
        beta, M = beta_pad, m_pad
    return theta, beta, M


def nstm_reference(x, params):
    """Pure-JAX f32 reference of NSTMBase.forward (eval mode)."""
    h = jnp.maximum(x @ params["w1"] + params["b1"], 0.0)
    logits = h @ params["w2"] + params["b2"]
    scale = params["bn_gamma"] / jnp.sqrt(params["bn_rvar"] + _BN_EPS)
    y = (logits - params["bn_rmean"]) * scale + params["bn_beta"]
    theta = jax.nn.softmax(y, axis=-1)
    te, we = params["topic_emb"], params["word_emb"]
    te_n = te / jnp.maximum(jnp.linalg.norm(te, axis=-1, keepdims=True), 1e-12)
    we_n = we / jnp.maximum(jnp.linalg.norm(we, axis=-1, keepdims=True), 1e-12)
    beta = te_n @ we_n.T
    return theta, beta, 1.0 - beta


def init_params(key, vocab_size, encoder_dim, n_topics, embed_size):
    """Deterministic parameter init mirroring the shapes in NSTMBase.__init__."""
    ks = jax.random.split(key, 6)
    lim1 = 1.0 / jnp.sqrt(vocab_size)
    w1 = jax.random.uniform(ks[0], (vocab_size, encoder_dim), jnp.float32, -lim1, lim1)
    b1 = jax.random.uniform(ks[1], (1, encoder_dim), jnp.float32, -lim1, lim1)
    lim2 = 1.0 / jnp.sqrt(encoder_dim)
    w2 = jax.random.uniform(ks[2], (encoder_dim, n_topics), jnp.float32, -lim2, lim2)
    b2 = jax.random.uniform(ks[3], (1, n_topics), jnp.float32, -lim2, lim2)
    bn_gamma = jnp.ones((1, n_topics), jnp.float32)
    bn_beta = jnp.zeros((1, n_topics), jnp.float32)
    bn_rmean = jnp.zeros((1, n_topics), jnp.float32)
    bn_rvar = jnp.ones((1, n_topics), jnp.float32)
    word_emb = jax.random.normal(ks[4], (vocab_size, embed_size), jnp.float32) * 0.001
    topic_emb = jax.random.normal(ks[5], (n_topics, embed_size), jnp.float32) * 0.001
    return dict(w1=w1, b1=b1, w2=w2, b2=b2,
                bn_gamma=bn_gamma, bn_beta=bn_beta,
                bn_rmean=bn_rmean, bn_rvar=bn_rvar,
                word_emb=word_emb, topic_emb=topic_emb)


def _run_case(key, batch, vocab, enc_dim, n_topics, embed, blk):
    kx, kp = jax.random.split(key)
    bow = jax.random.uniform(kx, (batch, vocab), jnp.float32, 0.0, 3.0)
    params = init_params(kp, vocab, enc_dim, n_topics, embed)
    prepped = prepare_params(params, block_v_enc=blk, block_v_beta=blk)
    theta, beta, M = nstm_forward(bow, prepped, block_v_enc=blk, block_v_beta=blk)
    jax.block_until_ready((theta, beta, M))

    assert theta.shape == (batch, n_topics)
    assert beta.shape == (n_topics, vocab) and M.shape == (n_topics, vocab)
    assert jnp.allclose(jnp.sum(theta, axis=-1), 1.0, atol=3e-3)
    assert jnp.allclose(M, 1.0 - beta, atol=1e-6)

    theta_r, beta_r, _ = nstm_reference(bow, params)
    assert float(jnp.max(jnp.abs(theta - theta_r))) < 1e-2
    assert float(jnp.max(jnp.abs(beta - beta_r))) < 1e-2


if __name__ == "__main__":
    key = jax.random.PRNGKey(0)
    k1, k2 = jax.random.split(key)

    # Case 1: tile-aligned shapes; vocab tiles of 256 exercise the multi-step
    # reduction / pipelined grid path (production defaults are 2048-4096).
    _run_case(k1, batch=8, vocab=512, enc_dim=128, n_topics=64, embed=256, blk=256)

    # Case 2: non-divisible vocab (384 % 256 != 0) and module-default n_topics=50
    # exercise the vocab zero-padding and K->128 lane padding paths.
    _run_case(k2, batch=4, vocab=384, enc_dim=128, n_topics=50, embed=256, blk=256)

    print("KERNEL_OK")
</pallas_src>

<mosaic_0001>
module attributes {stable_mosaic.version = 11 : i64} {
  func.func @_beta_kernel(%arg0: i32, %arg1: memref<64x256xbf16, #tpu.memory_space<vmem>>, %arg2: memref<256x256xbf16, #tpu.memory_space<vmem>>, %arg3: memref<1x256xf32, #tpu.memory_space<vmem>>, %arg4: memref<64x256xf32, #tpu.memory_space<vmem>>, %arg5: memref<64x256xf32, #tpu.memory_space<vmem>>) attributes {dimension_semantics = [#tpu.dimension_semantics<parallel>], iteration_bounds = array<i64: 2>, scalar_prefetch = 0 : i64, scratch_operands = 0 : i64, tpu.core_type = #tpu.core_type<tc>, window_params = [{pipeline_mode = #tpu.pipeline_mode<synchronous>, transform_indices = @transform_0, window_bounds = array<i64: 64, 256>}, {transform_indices = @transform_1, window_bounds = array<i64: 256, 256>}, {transform_indices = @transform_2, window_bounds = array<i64: 1, 256>}, {transform_indices = @transform_3, window_bounds = array<i64: 64, 256>}, {transform_indices = @transform_4, window_bounds = array<i64: 64, 256>}]} {
    %c0 = arith.constant 0 : index
    %c0_0 = arith.constant 0 : index
    %0 = vector.load %arg1[%c0, %c0_0] : memref<64x256xbf16, #tpu.memory_space<vmem>>, vector<64x256xbf16>
    %c0_1 = arith.constant 0 : index
    %c0_2 = arith.constant 0 : index
    %1 = vector.load %arg2[%c0_1, %c0_2] : memref<256x256xbf16, #tpu.memory_space<vmem>>, vector<256x256xbf16>
    %cst = arith.constant dense<0.000000e+00> : vector<64x256xf32>
    %2 = tpu.matmul %0, %1, %cst {dimension_numbers = #tpu.dot_dimension_numbers<[1], [0], [0], [1], [0, 0, 1, 1], [], []>} : vector<64x256xbf16>, vector<256x256xbf16>, vector<64x256xf32> -> vector<64x256xf32>
    %c0_3 = arith.constant 0 : index
    %c0_4 = arith.constant 0 : index
    %3 = vector.load %arg3[%c0_3, %c0_4] : memref<1x256xf32, #tpu.memory_space<vmem>>, vector<1x256xf32>
    %4 = vector.broadcast %3 : vector<1x256xf32> to vector<64x256xf32>
    %5 = arith.mulf %2, %4 : vector<64x256xf32>
    %c0_5 = arith.constant 0 : index
    %c0_6 = arith.constant 0 : index
    %6 = vector.load %arg4[%c0_5, %c0_6] : memref<64x256xf32, #tpu.memory_space<vmem>>, vector<64x256xf32>
    tpu.vector_store %arg4[%c0_5, %c0_6], %5 {strides = array<i32>} : memref<64x256xf32, #tpu.memory_space<vmem>>, vector<64x256xf32>,
    %cst_7 = arith.constant 1.000000e+00 : f32
    %7 = vector.broadcast %cst_7 : f32 to vector<64x256xf32>
    %8 = arith.subf %7, %5 : vector<64x256xf32>
    %c0_8 = arith.constant 0 : index
    %c0_9 = arith.constant 0 : index
    %9 = vector.load %arg5[%c0_8, %c0_9] : memref<64x256xf32, #tpu.memory_space<vmem>>, vector<64x256xf32>
    tpu.vector_store %arg5[%c0_8, %c0_9], %8 {strides = array<i32>} : memref<64x256xf32, #tpu.memory_space<vmem>>, vector<64x256xf32>,
    return
  }
  func.func @transform_0(%arg0: i32) -> (i32, i32) {
    %c0_i32 = arith.constant 0 : i32
    %c0_i32_0 = arith.constant 0 : i32
    %c0_i32_1 = arith.constant 0 : i32
    return %c0_i32, %c0_i32_0 : i32, i32
  }
  func.func @transform_1(%arg0: i32) -> (i32, i32) {
    %c0_i32 = arith.constant 0 : i32
    %c0_i32_0 = arith.constant 0 : i32
    return %c0_i32, %arg0 : i32, i32
  }
  func.func @transform_2(%arg0: i32) -> (i32, i32) {
    %c0_i32 = arith.constant 0 : i32
    %c0_i32_0 = arith.constant 0 : i32
    return %c0_i32, %arg0 : i32, i32
  }
  func.func @transform_3(%arg0: i32) -> (i32, i32) {
    %c0_i32 = arith.constant 0 : i32
    %c0_i32_0 = arith.constant 0 : i32
    return %c0_i32, %arg0 : i32, i32
  }
  func.func @transform_4(%arg0: i32) -> (i32, i32) {
    %c0_i32 = arith.constant 0 : i32
    %c0_i32_0 = arith.constant 0 : i32
    return %c0_i32, %arg0 : i32, i32
  }
}

module attributes {stable_mosaic.version = 11 : i64} {
  func.func @_encoder_kernel(%arg0: i32, %arg1: memref<8x256xf32, #tpu.memory_space<vmem>>, %arg2: memref<256x128xbf16, #tpu.memory_space<vmem>>, %arg3: memref<1x128xf32, #tpu.memory_space<vmem>>, %arg4: memref<128x128xf32, #tpu.memory_space<vmem>>, %arg5: memref<1x128xf32, #tpu.memory_space<vmem>>, %arg6: memref<8x128xf32, #tpu.memory_space<vmem>>, %arg7: memref<8x128xf32, #tpu.memory_space<vmem>>) attributes {dimension_semantics = [#tpu.dimension_semantics<arbitrary>], iteration_bounds = array<i64: 2>, scalar_prefetch = 0 : i64, scratch_operands = 1 : i64, tpu.core_type = #tpu.core_type<tc>, window_params = [{transform_indices = @transform_0, window_bounds = array<i64: 8, 256>}, {transform_indices = @transform_1, window_bounds = array<i64: 256, 128>}, {pipeline_mode = #tpu.pipeline_mode<synchronous>, transform_indices = @transform_2, window_bounds = array<i64: 1, 128>}, {pipeline_mode = #tpu.pipeline_mode<synchronous>, transform_indices = @transform_3, window_bounds = array<i64: 128, 128>}, {pipeline_mode = #tpu.pipeline_mode<synchronous>, transform_indices = @transform_4, window_bounds = array<i64: 1, 128>}, {pipeline_mode = #tpu.pipeline_mode<synchronous>, transform_indices = @transform_5, window_bounds = array<i64: 8, 128>}]} {
    %c0_i32 = arith.constant 0 : i32
    %0 = arith.cmpi eq, %arg0, %c0_i32 : i32
    %1 = arith.extui %0 : i1 to i32
    %c0_i32_0 = arith.constant 0 : i32
    %2 = arith.cmpi ne, %1, %c0_i32_0 : i32
    scf.if %2 {
      %cst_9 = arith.constant 0.000000e+00 : f32
      %13 = vector.broadcast %cst_9 : f32 to vector<8x128xf32>
      %c0_10 = arith.constant 0 : index
      %c0_11 = arith.constant 0 : index
      %14 = vector.load %arg7[%c0_10, %c0_11] : memref<8x128xf32, #tpu.memory_space<vmem>>, vector<8x128xf32>
      tpu.vector_store %arg7[%c0_10, %c0_11], %13 {strides = array<i32>} : memref<8x128xf32, #tpu.memory_space<vmem>>, vector<8x128xf32>,
    } else {
    }
    %c0 = arith.constant 0 : index
    %c0_1 = arith.constant 0 : index
    %3 = vector.load %arg1[%c0, %c0_1] : memref<8x256xf32, #tpu.memory_space<vmem>>, vector<8x256xf32>
    %4 = arith.truncf %3 : vector<8x256xf32> to vector<8x256xbf16>
    %c0_2 = arith.constant 0 : index
    %c0_3 = arith.constant 0 : index
    %5 = vector.load %arg7[%c0_2, %c0_3] : memref<8x128xf32, #tpu.memory_space<vmem>>, vector<8x128xf32>
    %c0_4 = arith.constant 0 : index
    %c0_5 = arith.constant 0 : index
    %6 = vector.load %arg2[%c0_4, %c0_5] : memref<256x128xbf16, #tpu.memory_space<vmem>>, vector<256x128xbf16>
    %cst = arith.constant dense<0.000000e+00> : vector<8x128xf32>
    %7 = tpu.matmul %4, %6, %cst {dimension_numbers = #tpu.dot_dimension_numbers<[1], [0], [0], [1], [0, 0, 1, 1], [], []>} : vector<8x256xbf16>, vector<256x128xbf16>, vector<8x128xf32> -> vector<8x128xf32>
    %8 = arith.addf %5, %7 : vector<8x128xf32>
    %c0_6 = arith.constant 0 : index
    %c0_7 = arith.constant 0 : index
    %9 = vector.load %arg7[%c0_6, %c0_7] : memref<8x128xf32, #tpu.memory_space<vmem>>, vector<8x128xf32>
    tpu.vector_store %arg7[%c0_6, %c0_7], %8 {strides = array<i32>} : memref<8x128xf32, #tpu.memory_space<vmem>>, vector<8x128xf32>,
    %c1_i32 = arith.constant 1 : i32
    %10 = arith.cmpi eq, %arg0, %c1_i32 : i32
    %11 = arith.extui %10 : i1 to i32
    %c0_i32_8 = arith.constant 0 : i32
    %12 = arith.cmpi ne, %11, %c0_i32_8 : i32
    scf.if %12 {
      %c0_9 = arith.constant 0 : index
      %c0_10 = arith.constant 0 : index
      %13 = vector.load %arg7[%c0_9, %c0_10] : memref<8x128xf32, #tpu.memory_space<vmem>>, vector<8x128xf32>
      %c0_11 = arith.constant 0 : index
      %c0_12 = arith.constant 0 : index
      %14 = vector.load %arg3[%c0_11, %c0_12] : memref<1x128xf32, #tpu.memory_space<vmem>>, vector<1x128xf32>
      %15 = vector.broadcast %14 : vector<1x128xf32> to vector<8x128xf32>
      %16 = arith.addf %13, %15 : vector<8x128xf32>
      %cst_13 = arith.constant 0.000000e+00 : f32
      %17 = vector.broadcast %cst_13 : f32 to vector<8x128xf32>
      %18 = arith.maximumf %16, %17 : vector<8x128xf32>
      %c0_14 = arith.constant 0 : index
      %c0_15 = arith.constant 0 : index
      %19 = vector.load %arg4[%c0_14, %c0_15] : memref<128x128xf32, #tpu.memory_space<vmem>>, vector<128x128xf32>
      %cst_16 = arith.constant dense<0.000000e+00> : vector<8x128xf32>
      %20 = tpu.matmul %18, %19, %cst_16 {dimension_numbers = #tpu.dot_dimension_numbers<[1], [0], [0], [1], [0, 0, 1, 1], [], []>} : vector<8x128xf32>, vector<128x128xf32>, vector<8x128xf32> -> vector<8x128xf32>
      %c0_17 = arith.constant 0 : index
      %c0_18 = arith.constant 0 : index
      %21 = vector.load %arg5[%c0_17, %c0_18] : memref<1x128xf32, #tpu.memory_space<vmem>>, vector<1x128xf32>
      %22 = vector.broadcast %21 : vector<1x128xf32> to vector<8x128xf32>
      %23 = arith.addf %20, %22 : vector<8x128xf32>
      %cst_19 = arith.constant dense<0xFF800000> : vector<8xf32>
      %24 = vector.multi_reduction <maximumf>, %23, %cst_19 [1] : vector<8x128xf32> to vector<8xf32>
      %25 = vector.shape_cast %24 : vector<8xf32> to vector<8x1xf32>
      %26 = vector.broadcast %25 : vector<8x1xf32> to vector<8x128xf32>
      %27 = arith.subf %23, %26 : vector<8x128xf32>
      %28 = math.exp %27 : vector<8x128xf32>
      %cst_20 = arith.constant dense<0.000000e+00> : vector<8xf32>
      %29 = vector.multi_reduction <add>, %28, %cst_20 [1] : vector<8x128xf32> to vector<8xf32>
      %30 = vector.shape_cast %29 : vector<8xf32> to vector<8x1xf32>
      %31 = tpu.reciprocal %30 {approx = true} : vector<8x1xf32> -> vector<8x1xf32>
      %32 = vector.broadcast %31 : vector<8x1xf32> to vector<8x128xf32>
      %33 = arith.mulf %28, %32 : vector<8x128xf32>
      %c0_21 = arith.constant 0 : index
      %c0_22 = arith.constant 0 : index
      %34 = vector.load %arg6[%c0_21, %c0_22] : memref<8x128xf32, #tpu.memory_space<vmem>>, vector<8x128xf32>
      tpu.vector_store %arg6[%c0_21, %c0_22], %33 {strides = array<i32>} : memref<8x128xf32, #tpu.memory_space<vmem>>, vector<8x128xf32>,
    } else {
    }
    return
  }
  func.func @transform_0(%arg0: i32) -> (i32, i32) {
    %c0_i32 = arith.constant 0 : i32
    %c0_i32_0 = arith.constant 0 : i32
    return %c0_i32, %arg0 : i32, i32
  }
  func.func @transform_1(%arg0: i32) -> (i32, i32) {
    %c0_i32 = arith.constant 0 : i32
    %c0_i32_0 = arith.constant 0 : i32
    return %arg0, %c0_i32 : i32, i32
  }
  func.func @transform_2(%arg0: i32) -> (i32, i32) {
    %c0_i32 = arith.constant 0 : i32
    %c0_i32_0 = arith.constant 0 : i32
    %c0_i32_1 = arith.constant 0 : i32
    return %c0_i32, %c0_i32_0 : i32, i32
  }
  func.func @transform_3(%arg0: i32) -> (i32, i32) {
    %c0_i32 = arith.constant 0 : i32
    %c0_i32_0 = arith.constant 0 : i32
    %c0_i32_1 = arith.constant 0 : i32
    return %c0_i32, %c0_i32_0 : i32, i32
  }
  func.func @transform_4(%arg0: i32) -> (i32, i32) {
    %c0_i32 = arith.constant 0 : i32
    %c0_i32_0 = arith.constant 0 : i32
    %c0_i32_1 = arith.constant 0 : i32
    return %c0_i32, %c0_i32_0 : i32, i32
  }
  func.func @transform_5(%arg0: i32) -> (i32, i32) {
    %c0_i32 = arith.constant 0 : i32
    %c0_i32_0 = arith.constant 0 : i32
    %c0_i32_1 = arith.constant 0 : i32
    return %c0_i32, %c0_i32_0 : i32, i32
  }
}

</mosaic_0001>

<llo_original>
// kernel: nstm_forward.3
$region0: #{nstm_forward.3}
  #allocation0 [shape = 'u32[]', space=smem, size = 0x4, offset = 0x4, fixed_abs, tag = 'smem constant byte address 0x4 - core index']
  #allocation1 [shape = 'u32[144,128]{1,0:T(1,128)}', space=vmem, size = 0x12000, scoped, tag = 'internal scratch']
  %s0 = inlined_call_operand.vmem [shape: bf16[64,256], index: 0, kind: input, shape index: {}]
  %s1 = inlined_call_operand.hbm [shape: bf16[256,512], index: 1, kind: input, shape index: {}]
  %s2 = inlined_call_operand.vmem [shape: f32[1,512], index: 2, kind: input, shape index: {}]
  %s3 = inlined_call_operand.hbm [shape: f32[64,512], index: 3, kind: output, shape index: {0}]
  %s4 = inlined_call_operand.hbm [shape: f32[64,512], index: 4, kind: output, shape index: {1}]
  %5 = xla_tuple %s3, %s4
  %s6 = sld [smem:[#allocation0]]
  $region57: #{nstm_forward.3} parent=0
    _
  %s8 = ssub.s32 1, %s6
  %s9 = scalar_select 0, %s8, %s6
  $region1: #{nstm_forward.3} parent=0
    #allocation2 [shape = 'u8[262144]{0}', space=vmem, size = 0x40000, scoped, tag = 'input window, operand 1']
    #allocation3 [shape = 's32[2]{0}', space=sflag, size = 0x8, scoped, tag = 'scoped memory for nstm_forward.3']
    #allocation4 [shape = 's32[2]{0}', space=sflag, size = 0x8, scoped, tag = 'scoped memory for nstm_forward.3']
    #allocation5 [shape = 'u8[131072]{0}', space=vmem, size = 0x20000, scoped, tag = 'output window, operand 0']
    #allocation6 [shape = 'u8[131072]{0}', space=vmem, size = 0x20000, scoped, tag = 'output window, operand 1']
    #allocation7 [shape = 's32[2]{0}', space=sflag, size = 0x8, scoped, tag = 'scoped memory for nstm_forward.3']
    %10 = vsyncpa [#allocation3], 0
    %s11 = scalar_lea.sflag [#allocation3], 1
    %12 = vsyncpa %s11, 0
    %13 = vsyncpa [#allocation4], 0
    %s14 = scalar_lea.sflag [#allocation4], 1
    %15 = vsyncpa %s14, 0
    %16 = vsyncpa [#allocation7], 0
    %s17 = scalar_lea.sflag [#allocation7], 1
    %18 = vsyncpa %s17, 0
    loop: start=0, step=1, limit=4
    $region2: #{nstm_forward.3} parent=1 // loop_pre_header
      _
    $region3: #{nstm_forward.3} parent=1 // loop_header
      %s20 = sphi 0, %s24
      %p21 = scmp.ge.s32.totalorder %s20, 4
      %s28 = sphi 0, %s28
      %s30 = sphi 0, %s28
      %s31 = sphi 0, %s30
      %s45 = sphi 0, %s31
      %s51 = sphi 0, %s53
      %s54 = sphi 0, %s51
      %s55 = sphi 0, %s54
      %s71 = sphi 0, %s55
      %s77 = sphi 0, %s79
      %s80 = sphi 0, %s77
      %s81 = sphi 0, %s80
      %s97 = sphi 0, %s81
      %s103 = sphi 0, %s105
      %s106 = sphi 0, %s103
      %s107 = sphi 0, %s106
      %s123 = sphi 0, %s107
      %s129 = sphi 0, %s131
      %s132 = sphi 0, %s129
      %s133 = sphi 0, %s132
      %s149 = sphi 0, %s133
    $region4: #{nstm_forward.3} parent=1 // loop_header_branch
      %23 = sbr.rel (%p21) target = $region8
    $region5: #{nstm_forward.3} parent=1 // loop_body
      %s25 = ssub.s32 %s20, 1
      %s26 = ssub.s32 %s20, 2
      %s27 = sadd.s32 %s20, 1
      %s29 = sadd.s32 %s28, 1
      %p32 = scmp.eq.s32.totalorder %s20, 1
      %p33 = scmp.ne.s32.totalorder %s28, %s30
      %p34 = scmp.eq.s32.totalorder %s20, 0
      %p35 = por %p33, %p34
      %p36 = scmp.ne.s32.totalorder %s28, %s30
      %p37 = scmp.eq.s32.totalorder %s25, 1
      %p38 = por %p36, %p37
      %p39 = scmp.ne.s32.totalorder %s30, %s31
      %p40 = scmp.eq.s32.totalorder %s25, 0
      %p41 = por %p39, %p40
      %p42 = scmp.ne.s32.totalorder %s30, %s31
      %p43 = scmp.eq.s32.totalorder %s26, 1
      %p44 = por %p42, %p43
      %p46 = scmp.ne.s32.totalorder %s31, %s45
      %p47 = scmp.eq.s32.totalorder %s26, 0
      %p48 = por %p46, %p47
      %s49 = ssub.s32 %s20, %s27
      %p50 = scmp.eq.s32.totalorder %s49, 0
      %s52 = sadd.s32 %s51, 1
      %s53 = scalar_select %p50, %s51, %s52
      %p56 = pneg %p50
      %p57 = scmp.eq.s32.totalorder %s20, 1
      %p58 = por %p56, %p57
      %p59 = scmp.ne.s32.totalorder %s51, %s54
      %p60 = scmp.eq.s32.totalorder %s20, 0
      %p61 = por %p59, %p60
      %p62 = scmp.ne.s32.totalorder %s51, %s54
      %p63 = scmp.eq.s32.totalorder %s25, 1
      %p64 = por %p62, %p63
      %p65 = scmp.ne.s32.totalorder %s54, %s55
      %p66 = scmp.eq.s32.totalorder %s25, 0
      %p67 = por %p65, %p66
      %p68 = scmp.ne.s32.totalorder %s54, %s55
      %p69 = scmp.eq.s32.totalorder %s26, 1
      %p70 = por %p68, %p69
      %p72 = scmp.ne.s32.totalorder %s55, %s71
      %p73 = scmp.eq.s32.totalorder %s26, 0
      %p74 = por %p72, %p73
      %s75 = ssub.s32 %s20, %s27
      %p76 = scmp.eq.s32.totalorder %s75, 0
      %s78 = sadd.s32 %s77, 1
      %s79 = scalar_select %p76, %s77, %s78
      %p82 = pneg %p76
      %p83 = scmp.eq.s32.totalorder %s20, 1
      %p84 = por %p82, %p83
      %p85 = scmp.ne.s32.totalorder %s77, %s80
      %p86 = scmp.eq.s32.totalorder %s20, 0
      %p87 = por %p85, %p86
      %p88 = scmp.ne.s32.totalorder %s77, %s80
      %p89 = scmp.eq.s32.totalorder %s25, 1
      %p90 = por %p88, %p89
      %p91 = scmp.ne.s32.totalorder %s80, %s81
      %p92 = scmp.eq.s32.totalorder %s25, 0
      %p93 = por %p91, %p92
      %p94 = scmp.ne.s32.totalorder %s80, %s81
      %p95 = scmp.eq.s32.totalorder %s26, 1
      %p96 = por %p94, %p95
      %p98 = scmp.ne.s32.totalorder %s81, %s97
      %p99 = scmp.eq.s32.totalorder %s26, 0
      %p100 = por %p98, %p99
      %s101 = ssub.s32 %s20, %s27
      %p102 = scmp.eq.s32.totalorder %s101, 0
      %s104 = sadd.s32 %s103, 1
      %s105 = scalar_select %p102, %s103, %s104
      %p108 = pneg %p102
      %p109 = scmp.eq.s32.totalorder %s20, 1
      %p110 = por %p108, %p109
      %p111 = scmp.ne.s32.totalorder %s103, %s106
      %p112 = scmp.eq.s32.totalorder %s20, 0
      %p113 = por %p111, %p112
      %p114 = scmp.ne.s32.totalorder %s103, %s106
      %p115 = scmp.eq.s32.totalorder %s25, 1
      %p116 = por %p114, %p115
      %p117 = scmp.ne.s32.totalorder %s106, %s107
      %p118 = scmp.eq.s32.totalorder %s25, 0
      %p119 = por %p117, %p118
      %p120 = scmp.ne.s32.totalorder %s106, %s107
      %p121 = scmp.eq.s32.totalorder %s26, 1
      %p122 = por %p120, %p121
      %p124 = scmp.ne.s32.totalorder %s107, %s123
      %p125 = scmp.eq.s32.totalorder %s26, 0
      %p126 = por %p124, %p125
      %s127 = ssub.s32 %s20, %s27
      %p128 = scmp.eq.s32.totalorder %s127, 0
      %s130 = sadd.s32 %s129, 1
      %s131 = scalar_select %p128, %s129, %s130
      %p134 = pneg %p128
      %p135 = scmp.eq.s32.totalorder %s20, 1
      %p136 = por %p134, %p135
      %p137 = scmp.ne.s32.totalorder %s129, %s132
      %p138 = scmp.eq.s32.totalorder %s20, 0
      %p139 = por %p137, %p138
      %p140 = scmp.ne.s32.totalorder %s129, %s132
      %p141 = scmp.eq.s32.totalorder %s25, 1
      %p142 = por %p140, %p141
      %p143 = scmp.ne.s32.totalorder %s132, %s133
      %p144 = scmp.eq.s32.totalorder %s25, 0
      %p145 = por %p143, %p144
      %p146 = scmp.ne.s32.totalorder %s132, %s133
      %p147 = scmp.eq.s32.totalorder %s26, 1
      %p148 = por %p146, %p147
      %p150 = scmp.ne.s32.totalorder %s133, %s149
      %p151 = scmp.eq.s32.totalorder %s26, 0
      %p152 = por %p150, %p151
      %p153 = scmp.le.s32.totalorder 1, %s20
      %p154 = scmp.lt.s32.totalorder %s20, 3
      %p155 = pnand %p153, %p154
      %p156 = pneg %p155
      // Predicated region
      $region9: #{nstm_forward.3} parent=5 // pred_check
        _
      $region10: #{nstm_forward.3} parent=5 // pred_check_branch
        %158 = sbr.rel (%p155) target = $region12
      $region11: #{nstm_forward.3} parent=5 // pred_region
        %s159 = ssub.s32 %s20, 1
        // Predicated region
        $region13: #{nstm_forward.3} parent=11 // pred_check
          %p160 = pneg %p41
        $region14: #{nstm_forward.3} parent=11 // pred_check_branch
          %162 = sbr.rel (%p160) target = $region16
        $region15: #{nstm_forward.3} parent=11 // pred_region
          _
        $region16: #{nstm_forward.3} parent=11 // pred_fallthru
          _
      $region12: #{nstm_forward.3} parent=5 // pred_fallthru
        _
      %p163 = scmp.lt.s32.totalorder %s20, 2
      // Predicated region
      $region17: #{nstm_forward.3} parent=5 // pred_check
        %p164 = pneg %p163
      $region18: #{nstm_forward.3} parent=5 // pred_check_branch
        %166 = sbr.rel (%p164) target = $region20
      $region19: #{nstm_forward.3} parent=5 // pred_region
        // Predicated region
        $region21: #{nstm_forward.3} parent=19 // pred_check
          %p167 = pneg %p61
        $region22: #{nstm_forward.3} parent=19 // pred_check_branch
          %169 = sbr.rel (%p167) target = $region24
        $region23: #{nstm_forward.3} parent=19 // pred_region
          %s170 = sand.u32 %s51, 1
          %s171 = scalar_lea.sflag [#allocation3], %s170
          %s172 = sand.u32 %s51, 1
          %s173 = smul.addr %s172, 256
          %s174 = scalar_lea.vmem [#allocation2], %s173
          %s175 = smul.u32 2, %s20
          %s177 = ssub.s32 4096, 4096
          %178 = vsyncadd %s171, %s177
          %s179 = smul.addr %s175, 64
          %s180 = scalar_lea.hbm %s1, %s179
          %s181 = sshll.u32 %s174, 4
          %s182 = int_to_ptr.vmem [resolvable:$true] %s181
          %187 = dma.hbm_to_vmem [thread:$0]  %s180, 4096, %s182, %s171, 256, 128, 8
        $region24: #{nstm_forward.3} parent=19 // pred_fallthru
          _
        // Predicated region
        $region25: #{nstm_forward.3} parent=19 // pred_check
          %p188 = pneg %p87
        $region26: #{nstm_forward.3} parent=19 // pred_check_branch
          %190 = sbr.rel (%p188) target = $region28
        $region27: #{nstm_forward.3} parent=19 // pred_region
          %s191 = smul.u32 2, %s20
          %p192 = scmp.lt.s32.totalorder %s191, 3
          %s193 = scalar_select %p192, %s191, 3
          %s194 = scalar_lea.vmem %s2, %s193
          %s195 = smul.u32 2, %s20
        $region28: #{nstm_forward.3} parent=19 // pred_fallthru
          _
      $region20: #{nstm_forward.3} parent=5 // pred_fallthru
        _
      %p196 = scmp.le.s32.totalorder 1, %s20
      %p197 = scmp.lt.s32.totalorder %s20, 3
      %p198 = pnand %p196, %p197
      %p199 = pneg %p198
      // Predicated region
      $region29: #{nstm_forward.3} parent=5 // pred_check
        _
      $region30: #{nstm_forward.3} parent=5 // pred_check_branch
        %201 = sbr.rel (%p198) target = $region32
      $region31: #{nstm_forward.3} parent=5 // pred_region
        %s202 = ssub.s32 %s20, 1
        %s203 = sand.u32 %s54, 1
        %s204 = scalar_lea.sflag [#allocation3], %s203
        %s205 = sand.u32 %s54, 1
        %s206 = smul.addr %s205, 256
        %s207 = scalar_lea.vmem [#allocation2], %s206
        // Predicated region
        $region33: #{nstm_forward.3} parent=31 // pred_check
          %p208 = pneg %p67
        $region34: #{nstm_forward.3} parent=31 // pred_check_branch
          %210 = sbr.rel (%p208) target = $region36
        $region35: #{nstm_forward.3} parent=31 // pred_region
          %211 = dma.done %s204, 4096
        $region36: #{nstm_forward.3} parent=31 // pred_fallthru
          _
        %p212 = pneg %p41
        %p213 = pneg %p38
        %s214 = sand.u32 %s54, 1
        %s215 = scalar_lea.sflag [#allocation3], %s214
        %s216 = sand.u32 %s54, 1
        %s217 = smul.addr %s216, 256
        %s218 = scalar_lea.vmem [#allocation2], %s217
        %p219 = pneg %p67
        %p220 = pneg %p64
        %s221 = smul.u32 2, %s25
        %p222 = scmp.lt.s32.totalorder %s221, 3
        %s223 = scalar_select %p222, %s221, 3
        %s224 = scalar_lea.vmem %s2, %s223
        %p225 = pneg %p93
        %p226 = pneg %p90
        %p227 = pneg %p119
        %p228 = pneg %p116
        %s229 = sand.u32 %s106, 1
        %s230 = scalar_lea.sflag [#allocation4], %s229
        %s231 = sand.u32 %s106, 1
        %s232 = smul.addr %s231, 128
        %s233 = scalar_lea.vmem [#allocation5], %s232
        %p234 = pneg %p145
        %p235 = pneg %p142
        %s236 = sand.u32 %s132, 1
        %s237 = scalar_lea.sflag [#allocation7], %s236
        %s238 = sand.u32 %s132, 1
        %s239 = smul.addr %s238, 128
        %s240 = scalar_lea.vmem [#allocation6], %s239
        %s241 = smul.u32 2, %s25
        %s242 = smul.u32 2, %s25
        %p243 = scmp.lt.s32.totalorder %s242, 3
        %s244 = scalar_select %p243, %s242, 3
        %s245 = scalar_lea.vmem %s2, %s244
        %s246 = smul.u32 2, %s25
        %s247 = smul.u32 2, %s25
        %s248 = smul.u32 2, %s25
        %v249 = vld [vmem:[%s0] sm:$0xff]
        %v250 = vld [vmem:[%s0 + $0x8] sm:$0xff]
        %v251 = vld [vmem:[%s0 + $0x10] sm:$0xff]
        %v252 = vld [vmem:[%s0 + $0x18] sm:$0xff]
        %v253 = vld [vmem:[%s0 + $0x20] sm:$0xff]
        %v254 = vld [vmem:[%s0 + $0x28] sm:$0xff]
        %v255 = vld [vmem:[%s0 + $0x30] sm:$0xff]
        %v256 = vld [vmem:[%s0 + $0x38] sm:$0xff]
        %v257 = vld [vmem:[%s207] sm:$0xff]
        %v258 = vld [vmem:[%s207 + $0x8] sm:$0xff]
        %v259 = vld [vmem:[%s207 + $0x10] sm:$0xff]
        %v260 = vld [vmem:[%s207 + $0x18] sm:$0xff]
        %v261 = vld [vmem:[%s207 + $0x20] sm:$0xff]
        %v262 = vld [vmem:[%s207 + $0x28] sm:$0xff]
        %v263 = vld [vmem:[%s207 + $0x30] sm:$0xff]
        %v264 = vld [vmem:[%s207 + $0x38] sm:$0xff]
        %v265 = vld [vmem:[%s207 + $0x40] sm:$0xff]
        %v266 = vld [vmem:[%s207 + $0x48] sm:$0xff]
        %v267 = vld [vmem:[%s207 + $0x50] sm:$0xff]
        %v268 = vld [vmem:[%s207 + $0x58] sm:$0xff]
        %v269 = vld [vmem:[%s207 + $0x60] sm:$0xff]
        %v270 = vld [vmem:[%s207 + $0x68] sm:$0xff]
        %v271 = vld [vmem:[%s207 + $0x70] sm:$0xff]
        %v272 = vld [vmem:[%s207 + $0x78] sm:$0xff]
        %v273 = vld [vmem:[%s207 + $0x80] sm:$0xff]
        %v274 = vld [vmem:[%s207 + $0x88] sm:$0xff]
        %v275 = vld [vmem:[%s207 + $0x90] sm:$0xff]
        %v276 = vld [vmem:[%s207 + $0x98] sm:$0xff]
        %v277 = vld [vmem:[%s207 + $0xa0] sm:$0xff]
        %v278 = vld [vmem:[%s207 + $0xa8] sm:$0xff]
        %v279 = vld [vmem:[%s207 + $0xb0] sm:$0xff]
        %v280 = vld [vmem:[%s207 + $0xb8] sm:$0xff]
        %v281 = vld [vmem:[%s207 + $0xc0] sm:$0xff]
        %v282 = vld [vmem:[%s207 + $0xc8] sm:$0xff]
        %v283 = vld [vmem:[%s207 + $0xd0] sm:$0xff]
        %v284 = vld [vmem:[%s207 + $0xd8] sm:$0xff]
        %v285 = vld [vmem:[%s207 + $0xe0] sm:$0xff]
        %v286 = vld [vmem:[%s207 + $0xe8] sm:$0xff]
        %v287 = vld [vmem:[%s207 + $0xf0] sm:$0xff]
        %v288 = vld [vmem:[%s207 + $0xf8] sm:$0xff]
        %v297 = vunpack.c.l.b16 %v249
        %v298 = vunpack.c.h.b16 %v249
        %v299 = vunpack.c.l.b16 %v250
        %v300 = vunpack.c.h.b16 %v250
        %v301 = vunpack.c.l.b16 %v251
        %v302 = vunpack.c.h.b16 %v251
        %v303 = vunpack.c.l.b16 %v252
        %v304 = vunpack.c.h.b16 %v252
        %v305 = vunpack.c.l.b16 %v253
        %v306 = vunpack.c.h.b16 %v253
        %v307 = vunpack.c.l.b16 %v254
        %v308 = vunpack.c.h.b16 %v254
        %v309 = vunpack.c.l.b16 %v255
        %v310 = vunpack.c.h.b16 %v255
        %v311 = vunpack.c.l.b16 %v256
        %v312 = vunpack.c.h.b16 %v256
        %v313 = vpack.c.b16 %v299, %v297
        %v314 = vpack.c.b16 %v300, %v298
        %v315 = vpack.c.b16 %v303, %v301
        %v316 = vpack.c.b16 %v304, %v302
        %v317 = vpack.c.b16 %v307, %v305
        %v318 = vpack.c.b16 %v308, %v306
        %v319 = vpack.c.b16 %v311, %v309
        %v320 = vpack.c.b16 %v312, %v310
        %v361 = vunpack.c.l.b16 %v257
        %v362 = vunpack.c.h.b16 %v257
        %v363 = vunpack.c.l.b16 %v258
        %v364 = vunpack.c.h.b16 %v258
        %v365 = vunpack.c.l.b16 %v259
        %v366 = vunpack.c.h.b16 %v259
        %v367 = vunpack.c.l.b16 %v260
        %v368 = vunpack.c.h.b16 %v260
        %v369 = vunpack.c.l.b16 %v261
        %v370 = vunpack.c.h.b16 %v261
        %v371 = vunpack.c.l.b16 %v262
        %v372 = vunpack.c.h.b16 %v262
        %v373 = vunpack.c.l.b16 %v263
        %v374 = vunpack.c.h.b16 %v263
        %v375 = vunpack.c.l.b16 %v264
        %v376 = vunpack.c.h.b16 %v264
        %v377 = vunpack.c.l.b16 %v265
        %v378 = vunpack.c.h.b16 %v265
        %v379 = vunpack.c.l.b16 %v266
        %v380 = vunpack.c.h.b16 %v266
        %v381 = vunpack.c.l.b16 %v267
        %v382 = vunpack.c.h.b16 %v267
        %v383 = vunpack.c.l.b16 %v268
        %v384 = vunpack.c.h.b16 %v268
        %v385 = vunpack.c.l.b16 %v269
        %v386 = vunpack.c.h.b16 %v269
        %v387 = vunpack.c.l.b16 %v270
        %v388 = vunpack.c.h.b16 %v270
        %v389 = vunpack.c.l.b16 %v271
        %v390 = vunpack.c.h.b16 %v271
        %v391 = vunpack.c.l.b16 %v272
        %v392 = vunpack.c.h.b16 %v272
        %v393 = vunpack.c.l.b16 %v273
        %v394 = vunpack.c.h.b16 %v273
        %v395 = vunpack.c.l.b16 %v274
        %v396 = vunpack.c.h.b16 %v274
        %v397 = vunpack.c.l.b16 %v275
        %v398 = vunpack.c.h.b16 %v275
        %v399 = vunpack.c.l.b16 %v276
        %v400 = vunpack.c.h.b16 %v276
        %v401 = vunpack.c.l.b16 %v277
        %v402 = vunpack.c.h.b16 %v277
        %v403 = vunpack.c.l.b16 %v278
        %v404 = vunpack.c.h.b16 %v278
        %v405 = vunpack.c.l.b16 %v279
        %v406 = vunpack.c.h.b16 %v279
        %v407 = vunpack.c.l.b16 %v280
        %v408 = vunpack.c.h.b16 %v280
        %v409 = vunpack.c.l.b16 %v281
        %v410 = vunpack.c.h.b16 %v281
        %v411 = vunpack.c.l.b16 %v282
        %v412 = vunpack.c.h.b16 %v282
        %v413 = vunpack.c.l.b16 %v283
        %v414 = vunpack.c.h.b16 %v283
        %v415 = vunpack.c.l.b16 %v284
        %v416 = vunpack.c.h.b16 %v284
        %v417 = vunpack.c.l.b16 %v285
        %v418 = vunpack.c.h.b16 %v285
        %v419 = vunpack.c.l.b16 %v286
        %v420 = vunpack.c.h.b16 %v286
        %v421 = vunpack.c.l.b16 %v287
        %v422 = vunpack.c.h.b16 %v287
        %v423 = vunpack.c.l.b16 %v288
        %v424 = vunpack.c.h.b16 %v288
        %v425 = vpack.c.b16 %v363, %v361
        %v426 = vpack.c.b16 %v364, %v362
        %v427 = vpack.c.b16 %v367, %v365
        %v428 = vpack.c.b16 %v368, %v366
        %v429 = vpack.c.b16 %v371, %v369
        %v430 = vpack.c.b16 %v372, %v370
        %v431 = vpack.c.b16 %v375, %v373
        %v432 = vpack.c.b16 %v376, %v374
        %v433 = vpack.c.b16 %v379, %v377
        %v434 = vpack.c.b16 %v380, %v378
        %v435 = vpack.c.b16 %v383, %v381
        %v436 = vpack.c.b16 %v384, %v382
        %v437 = vpack.c.b16 %v387, %v385
        %v438 = vpack.c.b16 %v388, %v386
        %v439 = vpack.c.b16 %v391, %v389
        %v440 = vpack.c.b16 %v392, %v390
        %v441 = vpack.c.b16 %v395, %v393
        %v442 = vpack.c.b16 %v396, %v394
        %v443 = vpack.c.b16 %v399, %v397
        %v444 = vpack.c.b16 %v400, %v398
        %v445 = vpack.c.b16 %v403, %v401
        %v446 = vpack.c.b16 %v404, %v402
        %v447 = vpack.c.b16 %v407, %v405
        %v448 = vpack.c.b16 %v408, %v406
        %v449 = vpack.c.b16 %v411, %v409
        %v450 = vpack.c.b16 %v412, %v410
        %v451 = vpack.c.b16 %v415, %v413
        %v452 = vpack.c.b16 %v416, %v414
        %v453 = vpack.c.b16 %v419, %v417
        %v454 = vpack.c.b16 %v420, %v418
        %v455 = vpack.c.b16 %v423, %v421
        %v456 = vpack.c.b16 %v424, %v422
        %489 = vmatprep.subr.bf16.mxu0 %v440
        %490 = vmatpush1.bf16.msra.mxu0 %v439
        %491 = vmatprep.subr.bf16.mxu0 %v438
        %492 = vmatpush1.bf16.msra.mxu0 %v437
        %493 = vmatprep.subr.bf16.mxu0 %v436
        %494 = vmatpush1.bf16.msra.mxu0 %v435
        %495 = vmatprep.subr.bf16.mxu0 %v434
        %496 = vmatpush1.bf16.msra.mxu0 %v433
        %497 = vmatprep.subr.bf16.mxu0 %v432
        %498 = vmatpush1.bf16.msra.mxu0 %v431
        %499 = vmatprep.subr.bf16.mxu0 %v430
        %500 = vmatpush1.bf16.msra.mxu0 %v429
        %501 = vmatprep.subr.bf16.mxu0 %v428
        %502 = vmatpush1.bf16.msra.mxu0 %v427
        %503 = vmatprep.subr.bf16.mxu0 %v426
        %504 = vmatpush1.bf16.msra.mxu0 %v425
        %505 = vmatprep.subr.bf16.mxu0 %v456
        %506 = vmatpush2.bf16.msra.mxu0 %v455
        %507 = vmatprep.subr.bf16.mxu0 %v454
        %508 = vmatpush2.bf16.msra.mxu0 %v453
        %509 = vmatprep.subr.bf16.mxu0 %v452
        %510 = vmatpush2.bf16.msra.mxu0 %v451
        %511 = vmatprep.subr.bf16.mxu0 %v450
        %512 = vmatpush2.bf16.msra.mxu0 %v449
        %513 = vmatprep.subr.bf16.mxu0 %v448
        %514 = vmatpush2.bf16.msra.mxu0 %v447
        %515 = vmatprep.subr.bf16.mxu0 %v446
        %516 = vmatpush2.bf16.msra.mxu0 %v445
        %517 = vmatprep.subr.bf16.mxu0 %v444
        %518 = vmatpush2.bf16.msra.mxu0 %v443
        %519 = vmatprep.subr.bf16.mxu0 %v442
        %520 = vmatpush2.bf16.msra.mxu0 %v441
        %521 = vmatprep.mubr.bf16.mxu0 %v314
        %522 = vmatmul.mubr.bf16.gmra.mxu0 %v313
        %v523 = vpop.f32.mrf.mxu0
        %v524 = vadd.f32 0.0, %v523
        %v525 = vpop.f32.mrf.mxu0
        %v526 = vadd.f32 0.0, %v525
        %v527 = vpop.f32.mrf.mxu0
        %v528 = vadd.f32 0.0, %v527
        %v529 = vpop.f32.mrf.mxu0
        %v530 = vadd.f32 0.0, %v529
        %531 = vmatprep.mubr.bf16.mxu0 %v316
        %532 = vmatmul.mubr.bf16.gmra.mxu0 %v315
        %v533 = vpop.f32.mrf.mxu0
        %v534 = vadd.f32 0.0, %v533
        %v535 = vpop.f32.mrf.mxu0
        %v536 = vadd.f32 0.0, %v535
        %v537 = vpop.f32.mrf.mxu0
        %v538 = vadd.f32 0.0, %v537
        %v539 = vpop.f32.mrf.mxu0
        %v540 = vadd.f32 0.0, %v539
        %541 = vmatprep.mubr.bf16.mxu0 %v318
        %542 = vmatmul.mubr.bf16.gmra.mxu0 %v317
        %v543 = vpop.f32.mrf.mxu0
        %v544 = vadd.f32 0.0, %v543
        %v545 = vpop.f32.mrf.mxu0
        %v546 = vadd.f32 0.0, %v545
        %v547 = vpop.f32.mrf.mxu0
        %v548 = vadd.f32 0.0, %v547
        %v549 = vpop.f32.mrf.mxu0
        %v550 = vadd.f32 0.0, %v549
        %551 = vmatprep.mubr.bf16.mxu0 %v320
        %552 = vmatmul.mubr.bf16.gmra.mxu0 %v319
        %v553 = vpop.f32.mrf.mxu0
        %v554 = vadd.f32 0.0, %v553
        %v555 = vpop.f32.mrf.mxu0
        %v556 = vadd.f32 0.0, %v555
        %v557 = vpop.f32.mrf.mxu0
        %v558 = vadd.f32 0.0, %v557
        %v559 = vpop.f32.mrf.mxu0
        %v560 = vadd.f32 0.0, %v559
        %561 = vdwg.mxu0
        %v562 = vld [vmem:[%s245] sm:$0x3]
        %v564 = vlaneseq
        %v565 = vshrl.u32 %v564, 7
        %v566 = vsub.s32 0, %v565
        %v567 = vrot.slane %v562, %v566
        %v568 = vlaneseq
        %v569 = vshrl.u32 %v568, 7
        %v570 = vsub.s32 1, %v569
        %v571 = vrot.slane %v562, %v570
        %v574 = vmul.f32 %v524, %v567
        %v575 = vmul.f32 %v526, %v571
        %v576 = vmul.f32 %v528, %v567
        %v577 = vmul.f32 %v530, %v571
        %v578 = vmul.f32 %v534, %v567
        %v579 = vmul.f32 %v536, %v571
        %v580 = vmul.f32 %v538, %v567
        %v581 = vmul.f32 %v540, %v571
        %v582 = vmul.f32 %v544, %v567
        %v583 = vmul.f32 %v546, %v571
        %v584 = vmul.f32 %v548, %v567
        %v585 = vmul.f32 %v550, %v571
        %v586 = vmul.f32 %v554, %v567
        %v587 = vmul.f32 %v556, %v571
        %v588 = vmul.f32 %v558, %v567
        %v589 = vmul.f32 %v560, %v571
        %590 = vst [vmem:[%s233] sm:$0xff] %v574
        %591 = vst [vmem:[%s233 + $0x8] sm:$0xff] %v575
        %592 = vst [vmem:[%s233 + $0x10] sm:$0xff] %v576
        %593 = vst [vmem:[%s233 + $0x18] sm:$0xff] %v577
        %594 = vst [vmem:[%s233 + $0x20] sm:$0xff] %v578
        %595 = vst [vmem:[%s233 + $0x28] sm:$0xff] %v579
        %596 = vst [vmem:[%s233 + $0x30] sm:$0xff] %v580
        %597 = vst [vmem:[%s233 + $0x38] sm:$0xff] %v581
        %598 = vst [vmem:[%s233 + $0x40] sm:$0xff] %v582
        %599 = vst [vmem:[%s233 + $0x48] sm:$0xff] %v583
        %600 = vst [vmem:[%s233 + $0x50] sm:$0xff] %v584
        %601 = vst [vmem:[%s233 + $0x58] sm:$0xff] %v585
        %602 = vst [vmem:[%s233 + $0x60] sm:$0xff] %v586
        %603 = vst [vmem:[%s233 + $0x68] sm:$0xff] %v587
        %604 = vst [vmem:[%s233 + $0x70] sm:$0xff] %v588
        %605 = vst [vmem:[%s233 + $0x78] sm:$0xff] %v589
        %v606 = vsub.f32 1.0, %v574
        %v607 = vsub.f32 1.0, %v575
        %v608 = vsub.f32 1.0, %v576
        %v609 = vsub.f32 1.0, %v577
        %v610 = vsub.f32 1.0, %v578
        %v611 = vsub.f32 1.0, %v579
        %v612 = vsub.f32 1.0, %v580
        %v613 = vsub.f32 1.0, %v581
        %v614 = vsub.f32 1.0, %v582
        %v615 = vsub.f32 1.0, %v583
        %v616 = vsub.f32 1.0, %v584
        %v617 = vsub.f32 1.0, %v585
        %v618 = vsub.f32 1.0, %v586
        %v619 = vsub.f32 1.0, %v587
        %v620 = vsub.f32 1.0, %v588
        %v621 = vsub.f32 1.0, %v589
        %622 = vst [vmem:[%s240] sm:$0xff] %v606
        %623 = vst [vmem:[%s240 + $0x8] sm:$0xff] %v607
        %624 = vst [vmem:[%s240 + $0x10] sm:$0xff] %v608
        %625 = vst [vmem:[%s240 + $0x18] sm:$0xff] %v609
        %626 = vst [vmem:[%s240 + $0x20] sm:$0xff] %v610
        %627 = vst [vmem:[%s240 + $0x28] sm:$0xff] %v611
        %628 = vst [vmem:[%s240 + $0x30] sm:$0xff] %v612
        %629 = vst [vmem:[%s240 + $0x38] sm:$0xff] %v613
        %630 = vst [vmem:[%s240 + $0x40] sm:$0xff] %v614
        %631 = vst [vmem:[%s240 + $0x48] sm:$0xff] %v615
        %632 = vst [vmem:[%s240 + $0x50] sm:$0xff] %v616
        %633 = vst [vmem:[%s240 + $0x58] sm:$0xff] %v617
        %634 = vst [vmem:[%s240 + $0x60] sm:$0xff] %v618
        %635 = vst [vmem:[%s240 + $0x68] sm:$0xff] %v619
        %636 = vst [vmem:[%s240 + $0x70] sm:$0xff] %v620
        %637 = vst [vmem:[%s240 + $0x78] sm:$0xff] %v621
        %s638 = sand.u32 %s106, 1
        %s639 = scalar_lea.sflag [#allocation4], %s638
        %s640 = sand.u32 %s106, 1
        %s641 = smul.addr %s640, 128
        %s642 = scalar_lea.vmem [#allocation5], %s641
        %s643 = sand.u32 %s132, 1
        %s644 = scalar_lea.sflag [#allocation7], %s643
        %s645 = sand.u32 %s132, 1
        %s646 = smul.addr %s645, 128
        %s647 = scalar_lea.vmem [#allocation6], %s646
        // Predicated region
        $region37: #{nstm_forward.3} parent=31 // pred_check
          %p648 = pneg %p116
        $region38: #{nstm_forward.3} parent=31 // pred_check_branch
          %650 = sbr.rel (%p648) target = $region40
        $region39: #{nstm_forward.3} parent=31 // pred_region
          %s651 = smul.u32 2, %s25
          %s653 = ssub.s32 2048, 2048
          %654 = vsyncadd %s639, %s653
          %s655 = smul.addr %s651, 128
          %s656 = scalar_lea.hbm %s3, %s655
          %s657 = sshll.u32 %s642, 4
          %s658 = int_to_ptr.vmem [resolvable:$true] %s657
          %663 = dma.vmem_to_hbm [thread:$0]  %s658, 2048, %s656, %s639, 256, 512, 16
        $region40: #{nstm_forward.3} parent=31 // pred_fallthru
          _
        // Predicated region
        $region41: #{nstm_forward.3} parent=31 // pred_check
          %p664 = pneg %p142
        $region42: #{nstm_forward.3} parent=31 // pred_check_branch
          %666 = sbr.rel (%p664) target = $region44
        $region43: #{nstm_forward.3} parent=31 // pred_region
          %s667 = smul.u32 2, %s25
          %s669 = ssub.s32 2048, 2048
          %670 = vsyncadd %s644, %s669
          %s671 = smul.addr %s667, 128
          %s672 = scalar_lea.hbm %s4, %s671
          %s673 = sshll.u32 %s647, 4
          %s674 = int_to_ptr.vmem [resolvable:$true] %s673
          %679 = dma.vmem_to_hbm [thread:$0]  %s674, 2048, %s672, %s644, 256, 512, 16
        $region44: #{nstm_forward.3} parent=31 // pred_fallthru
          _
      $region32: #{nstm_forward.3} parent=5 // pred_fallthru
        _
      %p680 = scmp.le.s32.totalorder 2, %s20
      // Predicated region
      $region45: #{nstm_forward.3} parent=5 // pred_check
        %p681 = pneg %p680
      $region46: #{nstm_forward.3} parent=5 // pred_check_branch
        %683 = sbr.rel (%p681) target = $region48
      $region47: #{nstm_forward.3} parent=5 // pred_region
        %s684 = ssub.s32 %s20, 2
        // Predicated region
        $region49: #{nstm_forward.3} parent=47 // pred_check
          %p685 = pneg %p122
        $region50: #{nstm_forward.3} parent=47 // pred_check_branch
          %687 = sbr.rel (%p685) target = $region52
        $region51: #{nstm_forward.3} parent=47 // pred_region
          %s688 = sand.u32 %s107, 1
          %s689 = scalar_lea.sflag [#allocation4], %s688
          %s690 = sand.u32 %s107, 1
          %s691 = smul.addr %s690, 128
          %s692 = scalar_lea.vmem [#allocation5], %s691
          %693 = dma.done %s689, 2048
        $region52: #{nstm_forward.3} parent=47 // pred_fallthru
          _
        // Predicated region
        $region53: #{nstm_forward.3} parent=47 // pred_check
          %p694 = pneg %p148
        $region54: #{nstm_forward.3} parent=47 // pred_check_branch
          %696 = sbr.rel (%p694) target = $region56
        $region55: #{nstm_forward.3} parent=47 // pred_region
          %s697 = sand.u32 %s133, 1
          %s698 = scalar_lea.sflag [#allocation7], %s697
          %s699 = sand.u32 %s133, 1
          %s700 = smul.addr %s699, 128
          %s701 = scalar_lea.vmem [#allocation6], %s700
          %702 = dma.done %s698, 2048
        $region56: #{nstm_forward.3} parent=47 // pred_fallthru
          _
      $region48: #{nstm_forward.3} parent=5 // pred_fallthru
        _
    $region6: #{nstm_forward.3} parent=1 // loop_footer
      %s24 = sadd.s32 1, %s20
    $region7: #{nstm_forward.3} parent=1 // loop_footer_branch
      %19 = sbr.rel target = $region3
    $region8: #{nstm_forward.3} parent=1 // loop_exit
      _
    %703 = vsyncpa [#allocation3], 1
    %s704 = scalar_lea.sflag [#allocation3], 1
    %705 = vsyncpa %s704, 1
    %706 = vsyncpa [#allocation4], 1
    %s707 = scalar_lea.sflag [#allocation4], 1
    %708 = vsyncpa %s707, 1
    %709 = vsyncpa [#allocation7], 1
    %s710 = scalar_lea.sflag [#allocation7], 1
    %711 = vsyncpa %s710, 1

// kernel: nstm_forward.2
$region0: #{nstm_forward.2}
  #allocation0 [shape = 'u32[]', space=smem, size = 0x4, offset = 0x4, fixed_abs, tag = 'smem constant byte address 0x4 - core index']
  #allocation1 [shape = 'u32[144,128]{1,0:T(1,128)}', space=vmem, size = 0x12000, scoped, tag = 'internal scratch']
  #allocation2 [shape = 'f32[8,128]{1,0:T(8,128)}', space=vmem, size = 0x1000, scoped, tag = 'scratch operand']
  %s0 = inlined_call_operand.hbm [shape: f32[8,512], index: 0, kind: input, shape index: {}]
  %s1 = inlined_call_operand.hbm [shape: bf16[512,128], index: 1, kind: input, shape index: {}]
  %s2 = inlined_call_operand.vmem [shape: f32[1,128], index: 2, kind: input, shape index: {}]
  %s3 = inlined_call_operand.hbm [shape: f32[128,128], index: 3, kind: input, shape index: {}]
  %s4 = inlined_call_operand.vmem [shape: f32[1,128], index: 4, kind: input, shape index: {}]
  %s5 = inlined_call_operand.hbm [shape: f32[8,128], index: 5, kind: output, shape index: {}]
  %s6 = sld [smem:[#allocation0]]
  $region73: #{nstm_forward.2} parent=0
    _
  %s8 = ssub.s32 1, %s6
  %s9 = scalar_select 0, %s8, %s6
  $region1: #{nstm_forward.2} parent=0
    #allocation3 [shape = 'u8[16384]{0}', space=vmem, size = 0x4000, scoped, tag = 'input window, operand 0']
    #allocation4 [shape = 's32[2]{0}', space=sflag, size = 0x8, scoped, tag = 'scoped memory for nstm_forward.2']
    #allocation5 [shape = 's32[2]{0}', space=sflag, size = 0x8, scoped, tag = 'scoped memory for nstm_forward.2']
    #allocation6 [shape = 'u8[131072]{0}', space=vmem, size = 0x20000, scoped, tag = 'input window, operand 1']
    #allocation7 [shape = 's32[2]{0}', space=sflag, size = 0x8, scoped, tag = 'scoped memory for nstm_forward.2']
    #allocation8 [shape = 'u8[65536]{0}', space=vmem, size = 0x10000, scoped, tag = 'input window, operand 3, single buffered']
    #allocation9 [shape = 'u8[4096]{0}', space=vmem, size = 0x1000, scoped, tag = 'output window, operand 0, single buffered']
    %10 = vsyncpa [#allocation4], 0
    %s11 = scalar_lea.sflag [#allocation4], 1
    %12 = vsyncpa %s11, 0
    %13 = vsyncpa [#allocation7], 0
    %s14 = scalar_lea.sflag [#allocation7], 1
    %15 = vsyncpa %s14, 0
    %16 = vsyncpa [#allocation5], 0
    loop: start=0, step=1, limit=4
    $region2: #{nstm_forward.2} parent=1 // loop_pre_header
      _
    $region3: #{nstm_forward.2} parent=1 // loop_header
      %s18 = sphi 0, %s22
      %p19 = scmp.ge.s32.totalorder %s18, 4
      %s28 = sphi 0, %s30
      %s31 = sphi 0, %s28
      %s32 = sphi 0, %s31
      %s48 = sphi 0, %s32
      %s54 = sphi 0, %s56
      %s57 = sphi 0, %s54
      %s58 = sphi 0, %s57
      %s74 = sphi 0, %s58
      %s78 = sphi 0, %s78
      %s80 = sphi 0, %s78
      %s81 = sphi 0, %s80
      %s95 = sphi 0, %s81
      %s99 = sphi 0, %s99
      %s101 = sphi 0, %s99
      %s102 = sphi 0, %s101
      %s116 = sphi 0, %s102
      %s120 = sphi 0, %s120
      %s122 = sphi 0, %s120
      %s123 = sphi 0, %s122
      %s137 = sphi 0, %s123
      %s141 = sphi 0, %s141
      %s143 = sphi 0, %s141
      %s144 = sphi 0, %s143
      %s158 = sphi 0, %s144
    $region4: #{nstm_forward.2} parent=1 // loop_header_branch
      %21 = sbr.rel (%p19) target = $region8
    $region5: #{nstm_forward.2} parent=1 // loop_body
      %s23 = ssub.s32 %s18, 1
      %s24 = ssub.s32 %s18, 2
      %s25 = sadd.s32 %s18, 1
      %s26 = ssub.s32 %s18, %s25
      %p27 = scmp.eq.s32.totalorder %s26, 0
      %s29 = sadd.s32 %s28, 1
      %s30 = scalar_select %p27, %s28, %s29
      %p33 = pneg %p27
      %p34 = scmp.eq.s32.totalorder %s18, 1
      %p35 = por %p33, %p34
      %p36 = scmp.ne.s32.totalorder %s28, %s31
      %p37 = scmp.eq.s32.totalorder %s18, 0
      %p38 = por %p36, %p37
      %p39 = scmp.ne.s32.totalorder %s28, %s31
      %p40 = scmp.eq.s32.totalorder %s23, 1
      %p41 = por %p39, %p40
      %p42 = scmp.ne.s32.totalorder %s31, %s32
      %p43 = scmp.eq.s32.totalorder %s23, 0
      %p44 = por %p42, %p43
      %p45 = scmp.ne.s32.totalorder %s31, %s32
      %p46 = scmp.eq.s32.totalorder %s24, 1
      %p47 = por %p45, %p46
      %p49 = scmp.ne.s32.totalorder %s32, %s48
      %p50 = scmp.eq.s32.totalorder %s24, 0
      %p51 = por %p49, %p50
      %s52 = ssub.s32 %s18, %s25
      %p53 = scmp.eq.s32.totalorder %s52, 0
      %s55 = sadd.s32 %s54, 1
      %s56 = scalar_select %p53, %s54, %s55
      %p59 = pneg %p53
      %p60 = scmp.eq.s32.totalorder %s18, 1
      %p61 = por %p59, %p60
      %p62 = scmp.ne.s32.totalorder %s54, %s57
      %p63 = scmp.eq.s32.totalorder %s18, 0
      %p64 = por %p62, %p63
      %p65 = scmp.ne.s32.totalorder %s54, %s57
      %p66 = scmp.eq.s32.totalorder %s23, 1
      %p67 = por %p65, %p66
      %p68 = scmp.ne.s32.totalorder %s57, %s58
      %p69 = scmp.eq.s32.totalorder %s23, 0
      %p70 = por %p68, %p69
      %p71 = scmp.ne.s32.totalorder %s57, %s58
      %p72 = scmp.eq.s32.totalorder %s24, 1
      %p73 = por %p71, %p72
      %p75 = scmp.ne.s32.totalorder %s58, %s74
      %p76 = scmp.eq.s32.totalorder %s24, 0
      %p77 = por %p75, %p76
      %s79 = sadd.s32 %s78, 1
      %p82 = scmp.eq.s32.totalorder %s18, 1
      %p83 = scmp.ne.s32.totalorder %s78, %s80
      %p84 = scmp.eq.s32.totalorder %s18, 0
      %p85 = por %p83, %p84
      %p86 = scmp.ne.s32.totalorder %s78, %s80
      %p87 = scmp.eq.s32.totalorder %s23, 1
      %p88 = por %p86, %p87
      %p89 = scmp.ne.s32.totalorder %s80, %s81
      %p90 = scmp.eq.s32.totalorder %s23, 0
      %p91 = por %p89, %p90
      %p92 = scmp.ne.s32.totalorder %s80, %s81
      %p93 = scmp.eq.s32.totalorder %s24, 1
      %p94 = por %p92, %p93
      %p96 = scmp.ne.s32.totalorder %s81, %s95
      %p97 = scmp.eq.s32.totalorder %s24, 0
      %p98 = por %p96, %p97
      %s100 = sadd.s32 %s99, 1
      %p103 = scmp.eq.s32.totalorder %s18, 1
      %p104 = scmp.ne.s32.totalorder %s99, %s101
      %p105 = scmp.eq.s32.totalorder %s18, 0
      %p106 = por %p104, %p105
      %p107 = scmp.ne.s32.totalorder %s99, %s101
      %p108 = scmp.eq.s32.totalorder %s23, 1
      %p109 = por %p107, %p108
      %p110 = scmp.ne.s32.totalorder %s101, %s102
      %p111 = scmp.eq.s32.totalorder %s23, 0
      %p112 = por %p110, %p111
      %p113 = scmp.ne.s32.totalorder %s101, %s102
      %p114 = scmp.eq.s32.totalorder %s24, 1
      %p115 = por %p113, %p114
      %p117 = scmp.ne.s32.totalorder %s102, %s116
      %p118 = scmp.eq.s32.totalorder %s24, 0
      %p119 = por %p117, %p118
      %s121 = sadd.s32 %s120, 1
      %p124 = scmp.eq.s32.totalorder %s18, 1
      %p125 = scmp.ne.s32.totalorder %s120, %s122
      %p126 = scmp.eq.s32.totalorder %s18, 0
      %p127 = por %p125, %p126
      %p128 = scmp.ne.s32.totalorder %s120, %s122
      %p129 = scmp.eq.s32.totalorder %s23, 1
      %p130 = por %p128, %p129
      %p131 = scmp.ne.s32.totalorder %s122, %s123
      %p132 = scmp.eq.s32.totalorder %s23, 0
      %p133 = por %p131, %p132
      %p134 = scmp.ne.s32.totalorder %s122, %s123
      %p135 = scmp.eq.s32.totalorder %s24, 1
      %p136 = por %p134, %p135
      %p138 = scmp.ne.s32.totalorder %s123, %s137
      %p139 = scmp.eq.s32.totalorder %s24, 0
      %p140 = por %p138, %p139
      %s142 = sadd.s32 %s141, 1
      %p145 = scmp.eq.s32.totalorder %s18, 1
      %p146 = scmp.ne.s32.totalorder %s141, %s143
      %p147 = scmp.eq.s32.totalorder %s18, 0
      %p148 = por %p146, %p147
      %p149 = scmp.ne.s32.totalorder %s141, %s143
      %p150 = scmp.eq.s32.totalorder %s23, 1
      %p151 = por %p149, %p150
      %p152 = scmp.ne.s32.totalorder %s143, %s144
      %p153 = scmp.eq.s32.totalorder %s23, 0
      %p154 = por %p152, %p153
      %p155 = scmp.ne.s32.totalorder %s143, %s144
      %p156 = scmp.eq.s32.totalorder %s24, 1
      %p157 = por %p155, %p156
      %p159 = scmp.ne.s32.totalorder %s144, %s158
      %p160 = scmp.eq.s32.totalorder %s24, 0
      %p161 = por %p159, %p160
      %p162 = scmp.le.s32.totalorder 1, %s18
      %p163 = scmp.lt.s32.totalorder %s18, 3
      %p164 = pnand %p162, %p163
      %p165 = pneg %p164
      // Predicated region
      $region9: #{nstm_forward.2} parent=5 // pred_check
        _
      $region10: #{nstm_forward.2} parent=5 // pred_check_branch
        %167 = sbr.rel (%p164) target = $region12
      $region11: #{nstm_forward.2} parent=5 // pred_region
        %s168 = ssub.s32 %s18, 1
        // Predicated region
        $region13: #{nstm_forward.2} parent=11 // pred_check
          %p169 = pneg %p91
        $region14: #{nstm_forward.2} parent=11 // pred_check_branch
          %171 = sbr.rel (%p169) target = $region16
        $region15: #{nstm_forward.2} parent=11 // pred_region
          _
        $region16: #{nstm_forward.2} parent=11 // pred_fallthru
          _
        // Predicated region
        $region17: #{nstm_forward.2} parent=11 // pred_check
          %p172 = pneg %p112
        $region18: #{nstm_forward.2} parent=11 // pred_check_branch
          %174 = sbr.rel (%p172) target = $region20
        $region19: #{nstm_forward.2} parent=11 // pred_region
          %s176 = ssub.s32 2048, 2048
          %177 = vsyncadd [#allocation7], %s176
          %s178 = sshll.u32 [#allocation8], 4
          %s179 = int_to_ptr.vmem [resolvable:$true] %s178
          %184 = dma.hbm_to_vmem [thread:$0]  %s3, 2048, %s179, [#allocation7], 128, 128, 8
        $region20: #{nstm_forward.2} parent=11 // pred_fallthru
          _
        // Predicated region
        $region21: #{nstm_forward.2} parent=11 // pred_check
          %p185 = pneg %p133
        $region22: #{nstm_forward.2} parent=11 // pred_check_branch
          %187 = sbr.rel (%p185) target = $region24
        $region23: #{nstm_forward.2} parent=11 // pred_region
          _
        $region24: #{nstm_forward.2} parent=11 // pred_fallthru
          _
      $region12: #{nstm_forward.2} parent=5 // pred_fallthru
        _
      %p188 = scmp.lt.s32.totalorder %s18, 2
      // Predicated region
      $region25: #{nstm_forward.2} parent=5 // pred_check
        %p189 = pneg %p188
      $region26: #{nstm_forward.2} parent=5 // pred_check_branch
        %191 = sbr.rel (%p189) target = $region28
      $region27: #{nstm_forward.2} parent=5 // pred_region
        // Predicated region
        $region29: #{nstm_forward.2} parent=27 // pred_check
          %p192 = pneg %p38
        $region30: #{nstm_forward.2} parent=27 // pred_check_branch
          %194 = sbr.rel (%p192) target = $region32
        $region31: #{nstm_forward.2} parent=27 // pred_region
          %s195 = sand.u32 %s28, 1
          %s196 = scalar_lea.sflag [#allocation4], %s195
          %s197 = sand.u32 %s28, 1
          %s198 = smul.addr %s197, 16
          %s199 = scalar_lea.vmem [#allocation3], %s198
          %s200 = smul.u32 2, %s18
          %s202 = ssub.s32 256, 256
          %203 = vsyncadd %s196, %s202
          %s204 = smul.addr %s200, 128
          %s205 = scalar_lea.hbm %s0, %s204
          %s207 = sshll.u32 %s199, 4
          %s208 = int_to_ptr.vmem [resolvable:$true] %s207
          %210 = dma.hbm_to_vmem [thread:$0]  %s205, 256, %s208, %s196
        $region32: #{nstm_forward.2} parent=27 // pred_fallthru
          _
        // Predicated region
        $region33: #{nstm_forward.2} parent=27 // pred_check
          %p211 = pneg %p64
        $region34: #{nstm_forward.2} parent=27 // pred_check_branch
          %213 = sbr.rel (%p211) target = $region36
        $region35: #{nstm_forward.2} parent=27 // pred_region
          %s214 = sand.u32 %s18, 1
          %s215 = scalar_lea.sflag [#allocation7], %s214
          %s216 = sand.u32 %s54, 1
          %s217 = smul.addr %s216, 128
          %s218 = scalar_lea.vmem [#allocation6], %s217
          %s219 = smul.u32 32, %s18
          %s221 = ssub.s32 2048, 2048
          %222 = vsyncadd %s215, %s221
          %s223 = smul.addr %s219, 64
          %s224 = scalar_lea.hbm %s1, %s223
          %s225 = sshll.u32 %s218, 4
          %s226 = int_to_ptr.vmem [resolvable:$true] %s225
          %231 = dma.hbm_to_vmem [thread:$0]  %s224, 2048, %s226, %s215, 64, 64, 4
        $region36: #{nstm_forward.2} parent=27 // pred_fallthru
          _
      $region28: #{nstm_forward.2} parent=5 // pred_fallthru
        _
      %p232 = scmp.le.s32.totalorder 1, %s18
      %p233 = scmp.lt.s32.totalorder %s18, 3
      %p234 = pnand %p232, %p233
      %p235 = pneg %p234
      // Predicated region
      $region37: #{nstm_forward.2} parent=5 // pred_check
        _
      $region38: #{nstm_forward.2} parent=5 // pred_check_branch
        %237 = sbr.rel (%p234) target = $region40
      $region39: #{nstm_forward.2} parent=5 // pred_region
        %s238 = ssub.s32 %s18, 1
        %s239 = sand.u32 %s31, 1
        %s240 = scalar_lea.sflag [#allocation4], %s239
        %s241 = sand.u32 %s31, 1
        %s242 = smul.addr %s241, 16
        %s243 = scalar_lea.vmem [#allocation3], %s242
        // Predicated region
        $region41: #{nstm_forward.2} parent=39 // pred_check
          %p244 = pneg %p44
        $region42: #{nstm_forward.2} parent=39 // pred_check_branch
          %246 = sbr.rel (%p244) target = $region44
        $region43: #{nstm_forward.2} parent=39 // pred_region
          %247 = dma.done %s240, 256
        $region44: #{nstm_forward.2} parent=39 // pred_fallthru
          _
        %s248 = sand.u32 %s23, 1
        %s249 = scalar_lea.sflag [#allocation7], %s248
        %s250 = sand.u32 %s57, 1
        %s251 = smul.addr %s250, 128
        %s252 = scalar_lea.vmem [#allocation6], %s251
        // Predicated region
        $region45: #{nstm_forward.2} parent=39 // pred_check
          %p253 = pneg %p70
        $region46: #{nstm_forward.2} parent=39 // pred_check_branch
          %255 = sbr.rel (%p253) target = $region48
        $region47: #{nstm_forward.2} parent=39 // pred_region
          %256 = dma.done %s249, 2048
        $region48: #{nstm_forward.2} parent=39 // pred_fallthru
          _
        // Predicated region
        $region49: #{nstm_forward.2} parent=39 // pred_check
          %p257 = pneg %p112
        $region50: #{nstm_forward.2} parent=39 // pred_check_branch
          %259 = sbr.rel (%p257) target = $region52
        $region51: #{nstm_forward.2} parent=39 // pred_region
          %260 = dma.done [#allocation7], 2048
        $region52: #{nstm_forward.2} parent=39 // pred_fallthru
          _
        %s261 = sand.u32 %s31, 1
        %s262 = scalar_lea.sflag [#allocation4], %s261
        %s263 = sand.u32 %s31, 1
        %s264 = smul.addr %s263, 16
        %s265 = scalar_lea.vmem [#allocation3], %s264
        %p266 = pneg %p44
        %p267 = pneg %p41
        %s268 = sand.u32 %s23, 1
        %s269 = scalar_lea.sflag [#allocation7], %s268
        %s270 = sand.u32 %s57, 1
        %s271 = smul.addr %s270, 128
        %s272 = scalar_lea.vmem [#allocation6], %s271
        %p273 = pneg %p70
        %p274 = pneg %p67
        %p275 = pneg %p91
        %p276 = pneg %p88
        %p277 = pneg %p112
        %p278 = pneg %p109
        %p279 = pneg %p133
        %p280 = pneg %p130
        %p281 = pneg %p154
        %p282 = pneg %p151
        %s283 = smul.u32 2, %s23
        %s284 = smul.u32 32, %s23
        %p286 = scmp.eq.s32.totalorder %s23, 0
        // Predicated region
        $region53: #{nstm_forward.2} parent=39 // pred_check
          %p287 = pneg %p286
        $region54: #{nstm_forward.2} parent=39 // pred_check_branch
          %289 = sbr.rel (%p287) target = $region56
        $region55: #{nstm_forward.2} parent=39 // pred_region
          %290 = vst [vmem:[#allocation2] sm:$0xff] 0.0
        $region56: #{nstm_forward.2} parent=39 // pred_fallthru
          _
        %v291 = vld [vmem:[%s243] sm:$0xff]
        %v292 = vld [vmem:[%s243 + $0x8] sm:$0xff]
        %v293 = vpack.c.bf16 %v291, %v291
        %v294 = vpack.c.bf16 %v292, %v292
        %v295 = vld [vmem:[#allocation2] sm:$0xff]
        %v296 = vld [vmem:[%s252] sm:$0xf]
        %v297 = vld [vmem:[%s252 + $0x4] sm:$0xf]
        %v298 = vld [vmem:[%s252 + $0x8] sm:$0xf]
        %v299 = vld [vmem:[%s252 + $0xc] sm:$0xf]
        %v300 = vld [vmem:[%s252 + $0x10] sm:$0xf]
        %v301 = vld [vmem:[%s252 + $0x14] sm:$0xf]
        %v302 = vld [vmem:[%s252 + $0x18] sm:$0xf]
        %v303 = vld [vmem:[%s252 + $0x1c] sm:$0xf]
        %v304 = vld [vmem:[%s252 + $0x20] sm:$0xf]
        %v305 = vld [vmem:[%s252 + $0x24] sm:$0xf]
        %v306 = vld [vmem:[%s252 + $0x28] sm:$0xf]
        %v307 = vld [vmem:[%s252 + $0x2c] sm:$0xf]
        %v308 = vld [vmem:[%s252 + $0x30] sm:$0xf]
        %v309 = vld [vmem:[%s252 + $0x34] sm:$0xf]
        %v310 = vld [vmem:[%s252 + $0x38] sm:$0xf]
        %v311 = vld [vmem:[%s252 + $0x3c] sm:$0xf]
        %v312 = vld [vmem:[%s252 + $0x40] sm:$0xf]
        %v313 = vld [vmem:[%s252 + $0x44] sm:$0xf]
        %v314 = vld [vmem:[%s252 + $0x48] sm:$0xf]
        %v315 = vld [vmem:[%s252 + $0x4c] sm:$0xf]
        %v316 = vld [vmem:[%s252 + $0x50] sm:$0xf]
        %v317 = vld [vmem:[%s252 + $0x54] sm:$0xf]
        %v318 = vld [vmem:[%s252 + $0x58] sm:$0xf]
        %v319 = vld [vmem:[%s252 + $0x5c] sm:$0xf]
        %v320 = vld [vmem:[%s252 + $0x60] sm:$0xf]
        %v321 = vld [vmem:[%s252 + $0x64] sm:$0xf]
        %v322 = vld [vmem:[%s252 + $0x68] sm:$0xf]
        %v323 = vld [vmem:[%s252 + $0x6c] sm:$0xf]
        %v324 = vld [vmem:[%s252 + $0x70] sm:$0xf]
        %v325 = vld [vmem:[%s252 + $0x74] sm:$0xf]
        %v326 = vld [vmem:[%s252 + $0x78] sm:$0xf]
        %v327 = vld [vmem:[%s252 + $0x7c] sm:$0xf]
        %v360 = vunpack.c.l.b16 %v296
        %v361 = vunpack.c.l.b16 %v297
        %v362 = vunpack.c.l.b16 %v298
        %v363 = vunpack.c.l.b16 %v299
        %v364 = vunpack.c.l.b16 %v300
        %v365 = vunpack.c.l.b16 %v301
        %v366 = vunpack.c.l.b16 %v302
        %v367 = vunpack.c.l.b16 %v303
        %v368 = vunpack.c.l.b16 %v304
        %v369 = vunpack.c.l.b16 %v305
        %v370 = vunpack.c.l.b16 %v306
        %v371 = vunpack.c.l.b16 %v307
        %v372 = vunpack.c.l.b16 %v308
        %v373 = vunpack.c.l.b16 %v309
        %v374 = vunpack.c.l.b16 %v310
        %v375 = vunpack.c.l.b16 %v311
        %v376 = vunpack.c.l.b16 %v312
        %v377 = vunpack.c.l.b16 %v313
        %v378 = vunpack.c.l.b16 %v314
        %v379 = vunpack.c.l.b16 %v315
        %v380 = vunpack.c.l.b16 %v316
        %v381 = vunpack.c.l.b16 %v317
        %v382 = vunpack.c.l.b16 %v318
        %v383 = vunpack.c.l.b16 %v319
        %v384 = vunpack.c.l.b16 %v320
        %v385 = vunpack.c.l.b16 %v321
        %v386 = vunpack.c.l.b16 %v322
        %v387 = vunpack.c.l.b16 %v323
        %v388 = vunpack.c.l.b16 %v324
        %v389 = vunpack.c.l.b16 %v325
        %v390 = vunpack.c.l.b16 %v326
        %v391 = vunpack.c.l.b16 %v327
        %v392 = vpack.c.b16 %v361, %v360
        %v393 = vpack.c.b16 %v363, %v362
        %v394 = vpack.c.b16 %v365, %v364
        %v395 = vpack.c.b16 %v367, %v366
        %v396 = vpack.c.b16 %v369, %v368
        %v397 = vpack.c.b16 %v371, %v370
        %v398 = vpack.c.b16 %v373, %v372
        %v399 = vpack.c.b16 %v375, %v374
        %v400 = vpack.c.b16 %v377, %v376
        %v401 = vpack.c.b16 %v379, %v378
        %v402 = vpack.c.b16 %v381, %v380
        %v403 = vpack.c.b16 %v383, %v382
        %v404 = vpack.c.b16 %v385, %v384
        %v405 = vpack.c.b16 %v387, %v386
        %v406 = vpack.c.b16 %v389, %v388
        %v407 = vpack.c.b16 %v391, %v390
        %424 = vmatprep.subr.bf16.mxu0 0
        %425 = vmatpush1.bf16.msra.mxu0 %v399
        %426 = vmatprep.subr.bf16.mxu0 0
        %427 = vmatpush1.bf16.msra.mxu0 %v398
        %428 = vmatprep.subr.bf16.mxu0 0
        %429 = vmatpush1.bf16.msra.mxu0 %v397
        %430 = vmatprep.subr.bf16.mxu0 0
        %431 = vmatpush1.bf16.msra.mxu0 %v396
        %432 = vmatprep.subr.bf16.mxu0 0
        %433 = vmatpush1.bf16.msra.mxu0 %v395
        %434 = vmatprep.subr.bf16.mxu0 0
        %435 = vmatpush1.bf16.msra.mxu0 %v394
        %436 = vmatprep.subr.bf16.mxu0 0
        %437 = vmatpush1.bf16.msra.mxu0 %v393
        %438 = vmatprep.subr.bf16.mxu0 0
        %439 = vmatpush1.bf16.msra.mxu0 %v392
        %440 = vmatprep.subr.bf16.mxu0 0
        %441 = vmatpush2.bf16.msra.mxu0 %v407
        %442 = vmatprep.subr.bf16.mxu0 0
        %443 = vmatpush2.bf16.msra.mxu0 %v406
        %444 = vmatprep.subr.bf16.mxu0 0
        %445 = vmatpush2.bf16.msra.mxu0 %v405
        %446 = vmatprep.subr.bf16.mxu0 0
        %447 = vmatpush2.bf16.msra.mxu0 %v404
        %448 = vmatprep.subr.bf16.mxu0 0
        %449 = vmatpush2.bf16.msra.mxu0 %v403
        %450 = vmatprep.subr.bf16.mxu0 0
        %451 = vmatpush2.bf16.msra.mxu0 %v402
        %452 = vmatprep.subr.bf16.mxu0 0
        %453 = vmatpush2.bf16.msra.mxu0 %v401
        %454 = vmatprep.subr.bf16.mxu0 0
        %455 = vmatpush2.bf16.msra.mxu0 %v400
        %456 = vmatprep.mubr.bf16.mxu0 %v294
        %457 = vmatmul.mubr.bf16.gmra.mxu0 %v293
        %v458 = vpop.f32.mrf.mxu0
        %v459 = vadd.f32 0.0, %v458
        %v460 = vpop.f32.mrf.mxu0
        %v461 = vpop.f32.mrf.mxu0
        %v462 = vpop.f32.mrf.mxu0
        %463 = vdwg.mxu0
        %v464 = vadd.f32 %v295, %v459
        %465 = vst [vmem:[#allocation2] sm:$0xff] %v464
        %p466 = scmp.eq.s32.totalorder %s23, 1
        // Predicated region
        $region57: #{nstm_forward.2} parent=39 // pred_check
          %p467 = pneg %p466
        $region58: #{nstm_forward.2} parent=39 // pred_check_branch
          %469 = sbr.rel (%p467) target = $region60
        $region59: #{nstm_forward.2} parent=39 // pred_region
          %v470 = vld [vmem:[#allocation2] sm:$0xff]
          %v471 = vld [vmem:[%s2] sm:$0x1]
          %v473 = vlaneseq
          %v474 = vshrl.u32 %v473, 7
          %v475 = vsub.s32 0, %v474
          %v476 = vrot.slane %v471, %v475
          %v478 = vadd.f32 %v470, %v476
          %v479 = vmax.f32 %v478, 0.0
          %v480 = vld [vmem:[#allocation8] sm:$0xff]
          %v481 = vld [vmem:[#allocation8 + $0x8] sm:$0xff]
          %v482 = vld [vmem:[#allocation8 + $0x10] sm:$0xff]
          %v483 = vld [vmem:[#allocation8 + $0x18] sm:$0xff]
          %v484 = vld [vmem:[#allocation8 + $0x20] sm:$0xff]
          %v485 = vld [vmem:[#allocation8 + $0x28] sm:$0xff]
          %v486 = vld [vmem:[#allocation8 + $0x30] sm:$0xff]
          %v487 = vld [vmem:[#allocation8 + $0x38] sm:$0xff]
          %v488 = vld [vmem:[#allocation8 + $0x40] sm:$0xff]
          %v489 = vld [vmem:[#allocation8 + $0x48] sm:$0xff]
          %v490 = vld [vmem:[#allocation8 + $0x50] sm:$0xff]
          %v491 = vld [vmem:[#allocation8 + $0x58] sm:$0xff]
          %v492 = vld [vmem:[#allocation8 + $0x60] sm:$0xff]
          %v493 = vld [vmem:[#allocation8 + $0x68] sm:$0xff]
          %v494 = vld [vmem:[#allocation8 + $0x70] sm:$0xff]
          %v495 = vld [vmem:[#allocation8 + $0x78] sm:$0xff]
          %v496 = vld [vmem:[%s4] sm:$0x1]
          %v498 = vlaneseq
          %v499 = vshrl.u32 %v498, 7
          %v500 = vsub.s32 0, %v499
          %v501 = vrot.slane %v496, %v500
          %503 = vmatprep.subr.mxu0 0.0
          %504 = vmatpush1.msra.mxu0 %v495
          %505 = vmatprep.subr.mxu0 0.0
          %506 = vmatpush1.msra.mxu0 %v494
          %507 = vmatprep.subr.mxu0 0.0
          %508 = vmatpush1.msra.mxu0 %v493
          %509 = vmatprep.subr.mxu0 0.0
          %510 = vmatpush1.msra.mxu0 %v492
          %511 = vmatprep.subr.mxu0 0.0
          %512 = vmatpush1.msra.mxu0 %v491
          %513 = vmatprep.subr.mxu0 0.0
          %514 = vmatpush1.msra.mxu0 %v490
          %515 = vmatprep.subr.mxu0 0.0
          %516 = vmatpush1.msra.mxu0 %v489
          %517 = vmatprep.subr.mxu0 0.0
          %518 = vmatpush1.msra.mxu0 %v488
          %519 = vmatprep.subr.mxu0 0.0
          %520 = vmatpush1.msra.mxu0 %v487
          %521 = vmatprep.subr.mxu0 0.0
          %522 = vmatpush1.msra.mxu0 %v486
          %523 = vmatprep.subr.mxu0 0.0
          %524 = vmatpush1.msra.mxu0 %v485
          %525 = vmatprep.subr.mxu0 0.0
          %526 = vmatpush1.msra.mxu0 %v484
          %527 = vmatprep.subr.mxu0 0.0
          %528 = vmatpush1.msra.mxu0 %v483
          %529 = vmatprep.subr.mxu0 0.0
          %530 = vmatpush1.msra.mxu0 %v482
          %531 = vmatprep.subr.mxu0 0.0
          %532 = vmatpush1.msra.mxu0 %v481
          %533 = vmatprep.subr.mxu0 0.0
          %534 = vmatpush1.msra.mxu0 %v480
          %535 = vmatprep.subr.mxu0 0.0
          %536 = vmatpush2.msra.mxu0 0.0
          %537 = vmatprep.subr.mxu0 0.0
          %538 = vmatpush2.msra.mxu0 0.0
          %539 = vmatprep.subr.mxu0 0.0
          %540 = vmatpush2.msra.mxu0 0.0
          %541 = vmatprep.subr.mxu0 0.0
          %542 = vmatpush2.msra.mxu0 0.0
          %543 = vmatprep.subr.mxu0 0.0
          %544 = vmatpush2.msra.mxu0 0.0
          %545 = vmatprep.subr.mxu0 0.0
          %546 = vmatpush2.msra.mxu0 0.0
          %547 = vmatprep.subr.mxu0 0.0
          %548 = vmatpush2.msra.mxu0 0.0
          %549 = vmatprep.subr.mxu0 0.0
          %550 = vmatpush2.msra.mxu0 0.0
          %551 = vmatprep.subr.mxu0 0.0
          %552 = vmatpush2.msra.mxu0 0.0
          %553 = vmatprep.subr.mxu0 0.0
          %554 = vmatpush2.msra.mxu0 0.0
          %555 = vmatprep.subr.mxu0 0.0
          %556 = vmatpush2.msra.mxu0 0.0
          %557 = vmatprep.subr.mxu0 0.0
          %558 = vmatpush2.msra.mxu0 0.0
          %559 = vmatprep.subr.mxu0 0.0
          %560 = vmatpush2.msra.mxu0 0.0
          %561 = vmatprep.subr.mxu0 0.0
          %562 = vmatpush2.msra.mxu0 0.0
          %563 = vmatprep.subr.mxu0 0.0
          %564 = vmatpush2.msra.mxu0 0.0
          %565 = vmatprep.subr.mxu0 0.0
          %566 = vmatpush2.msra.mxu0 0.0
          %567 = vmatprep.mubr.f32.mxu0 0.0
          %568 = vmatmul.mubr.f32.gmra.mxu0 %v479
          %v569 = vpop.f32.mrf.mxu0
          %v570 = vadd.f32 %v501, %v569
          %v571 = vpop.f32.mrf.mxu0
          %572 = vdwg.mxu0
          %573 = vmax.xlane.f32.xlu0 %v570
          %v574 = vpop.xlane.xlu0 %573
          %v575 = vsub.f32 %v570, %v574
          %v576 = vmul.f32 %v575, 1.442695
          %v577 = vpow.pop %v576
          %578 = vadd.xlane.f32.xlu0 %v577
          %v579 = vpop.xlane.xlu0 %578
          %v580 = vrcp.pop %v579
          %v581 = vmul.f32 %v577, %v580
          %582 = vst [vmem:[#allocation9] sm:$0xff] %v581
        $region60: #{nstm_forward.2} parent=39 // pred_fallthru
          _
        // Predicated region
        $region61: #{nstm_forward.2} parent=39 // pred_check
          %p583 = pneg %p151
        $region62: #{nstm_forward.2} parent=39 // pred_check_branch
          %585 = sbr.rel (%p583) target = $region64
        $region63: #{nstm_forward.2} parent=39 // pred_region
          %s587 = ssub.s32 128, 128
          %588 = vsyncadd [#allocation5], %s587
          %s590 = sshll.u32 [#allocation9], 4
          %s591 = int_to_ptr.vmem [resolvable:$true] %s590
          %593 = dma.vmem_to_hbm [thread:$0]  %s591, 128, %s5, [#allocation5]
        $region64: #{nstm_forward.2} parent=39 // pred_fallthru
          _
        // Predicated region
        $region65: #{nstm_forward.2} parent=39 // pred_check
          %p594 = pneg %p151
        $region66: #{nstm_forward.2} parent=39 // pred_check_branch
          %596 = sbr.rel (%p594) target = $region68
        $region67: #{nstm_forward.2} parent=39 // pred_region
          %597 = dma.done [#allocation5], 128
        $region68: #{nstm_forward.2} parent=39 // pred_fallthru
          _
      $region40: #{nstm_forward.2} parent=5 // pred_fallthru
        _
      %p598 = scmp.le.s32.totalorder 2, %s18
      // Predicated region
      $region69: #{nstm_forward.2} parent=5 // pred_check
        %p599 = pneg %p598
      $region70: #{nstm_forward.2} parent=5 // pred_check_branch
        %601 = sbr.rel (%p599) target = $region72
      $region71: #{nstm_forward.2} parent=5 // pred_region
        %s602 = ssub.s32 %s18, 2
      $region72: #{nstm_forward.2} parent=5 // pred_fallthru
        _
    $region6: #{nstm_forward.2} parent=1 // loop_footer
      %s22 = sadd.s32 1, %s18
    $region7: #{nstm_forward.2} parent=1 // loop_footer_branch
      %17 = sbr.rel target = $region3
    $region8: #{nstm_forward.2} parent=1 // loop_exit
      _
    %603 = vsyncpa [#allocation4], 1
    %s604 = scalar_lea.sflag [#allocation4], 1
    %605 = vsyncpa %s604, 1
    %606 = vsyncpa [#allocation7], 1
    %s607 = scalar_lea.sflag [#allocation7], 1
    %608 = vsyncpa %s607, 1
    %609 = vsyncpa [#allocation5], 1
    %s610 = scalar_lea.sflag [#allocation5], 1
    %611 = vsyncpa %s610, 1

</llo_original>
